<compile_context>
chip_gen: v7x
topology: tpu7x:2x2x1
jax: 0.10.0
libtpu: 0.0.40
codegen_flags: <defaults>
</compile_context>

<pallas_src>
import functools

import jax
import jax.numpy as jnp
from jax.experimental import pallas as pl
from jax.experimental.pallas import tpu as pltpu

_LANE = 128
_MIB = 1024 * 1024


def _round_up(x, m):
    return (x + m - 1) // m * m


def _mlp_kernel(x_ref,
                w1_ref, b1_ref,
                w2_ref, b2_ref,
                w3_ref, b3_ref,
                w4_ref, b4_ref,
                o_ref):
    # Cast the f32 input tile to bf16 in-kernel (VPU work hidden under the MXU).
    x = x_ref[...].astype(jnp.bfloat16)

    # bf16 MXU operands, f32 accumulation. Bias-add / ReLU stay f32 (v5e-safe).
    h = jnp.dot(x, w1_ref[...], preferred_element_type=jnp.float32)
    h = jnp.maximum(h + b1_ref[...], 0.0)

    h = jnp.dot(h.astype(jnp.bfloat16), w2_ref[...],
                preferred_element_type=jnp.float32)
    h = jnp.maximum(h + b2_ref[...], 0.0)

    h = jnp.dot(h.astype(jnp.bfloat16), w3_ref[...],
                preferred_element_type=jnp.float32)
    h = jnp.maximum(h + b3_ref[...], 0.0)

    out = jnp.dot(h.astype(jnp.bfloat16), w4_ref[...],
                  preferred_element_type=jnp.float32)
    o_ref[...] = (out + b4_ref[...]).astype(o_ref.dtype)


def _vmem_estimate(block_b, in_dim, h1, h2, h3, out_pad):
    """Rough resident-VMEM bytes for one grid step.

    Weights/biases have a constant index_map; BlockSpec double-buffers them by
    default, so count them twice. Activations: f32 x tile + f32 out tile (both
    double-buffered) + f32 intermediates.
    """
    wbytes = 2 * (in_dim * h1 + h1 * h2 + h2 * h3 + h3 * out_pad)   # bf16
    bbytes = 4 * (h1 + h2 + h3 + out_pad)                           # f32
    resident = 2 * (wbytes + bbytes)
    acts = block_b * (2 * in_dim * 4          # x tile, f32, double-buffered
                      + 2 * out_pad * 4       # out tile, f32, double-buffered
                      + (h1 + h2 + h3) * 4)   # f32 intermediates
    return resident + acts


def _vmem_capacity_bytes():
    """Per-core VMEM capacity; v7x-safe fallback if the query is unavailable."""
    try:
        cap = int(pltpu.get_tpu_info().vmem_capacity_bytes)
        if cap > 0:
            return cap
    except Exception:
        pass
    return 64 * _MIB


@functools.partial(jax.jit, static_argnames=("block_b", "vmem_limit_bytes"))
def _mlp_pallas_call(x, w1, b1, w2, b2, w3, b3, w4, b4, *,
                     block_b, vmem_limit_bytes):
    B, in_dim = x.shape
    h1, h2, h3, out_pad = w1.shape[1], w2.shape[1], w3.shape[1], w4.shape[1]

    def const_spec(arr):
        # Constant index_map -> same (whole-array) block every grid step.
        return pl.BlockSpec(arr.shape, lambda i: (0, 0))

    flops = 2 * B * (in_dim * h1 + h1 * h2 + h2 * h3 + h3 * out_pad)
    bytes_accessed = (
        x.size * x.dtype.itemsize
        + sum(a.size * a.dtype.itemsize
              for a in (w1, b1, w2, b2, w3, b3, w4, b4))
        + B * out_pad * 4)

    # NOTE: if B % block_b != 0 the last grid step reads rows past the end of x
    # (garbage) and its extra output rows are dropped; rows are independent so
    # this is safe.
    return pl.pallas_call(
        _mlp_kernel,
        out_shape=jax.ShapeDtypeStruct((B, out_pad), jnp.float32),
        grid_spec=pltpu.PrefetchScalarGridSpec(
            num_scalar_prefetch=0,
            grid=(pl.cdiv(B, block_b),),
            in_specs=[
                pl.BlockSpec((block_b, in_dim), lambda i: (i, 0)),
                const_spec(w1), const_spec(b1),
                const_spec(w2), const_spec(b2),
                const_spec(w3), const_spec(b3),
                const_spec(w4), const_spec(b4),
            ],
            out_specs=pl.BlockSpec((block_b, out_pad), lambda i: (i, 0)),
        ),
        compiler_params=pltpu.CompilerParams(
            dimension_semantics=("parallel",),
            vmem_limit_bytes=vmem_limit_bytes),
        cost_estimate=pl.CostEstimate(flops=flops, transcendentals=0,
                                      bytes_accessed=bytes_accessed),
    )(x, w1, b1, w2, b2, w3, b3, w4, b4)


def prepare_params(params):
    """One-time preprocessing (hoist out of the per-call path).

    * Pad every layer's output features to a multiple of 128 (lane-dense
      matmuls and stores); the next layer's input rows are padded to match.
      Padded weight rows/cols and biases are zero, so the math is exact.
    * Cast weights to bf16 (MXU operands), keep biases f32.
    Returns (prepped_params, output_dim).
    """
    out_dim = params["w4"].shape[1]
    prep = {}
    prev_pad = params["w1"].shape[0]  # input_dim is assumed lane-friendly
    for i in (1, 2, 3, 4):
        w = params[f"w{i}"]
        b = params[f"b{i}"]
        rows, cols = w.shape
        cols_pad = _round_up(cols, _LANE)
        w = jnp.pad(w, ((0, prev_pad - rows), (0, cols_pad - cols)))
        b = jnp.pad(b, ((0, 0), (0, cols_pad - cols)))
        prep[f"w{i}"] = w.astype(jnp.bfloat16)
        prep[f"b{i}"] = b.astype(jnp.float32)
        prev_pad = cols_pad
    return prep, out_dim


def mlp_forward(x, prep, out_dim, block_b=512):
    """x: (B, input_dim) float32. prep: output of prepare_params."""
    B, in_dim = x.shape
    h1, h2, h3 = prep["w1"].shape[1], prep["w2"].shape[1], prep["w3"].shape[1]
    out_pad = prep["w4"].shape[1]

    # 16-aligned batch tile (bf16 sublane packing), clamped to B.
    block_b = max(16, min(_round_up(block_b, 16), _round_up(B, 16)))

    # Prefer >= 4 grid steps (>= 2 per core on dual-TC chips) so activation
    # DMAs overlap with compute, as long as the tile stays >= 128 rows.
    while block_b >= 256 and pl.cdiv(B, block_b) < 4:
        block_b //= 2

    # Generation-aware VMEM budget: capacity minus a safety margin.
    cap = _vmem_capacity_bytes()                       # 128 MiB v5e/v6e, 64 MiB v7x
    budget = max(32 * _MIB, cap - 24 * _MIB)
    while (block_b > 128 and
           _vmem_estimate(block_b, in_dim, h1, h2, h3, out_pad) > budget):
        block_b = max(128, _round_up(block_b // 2, 16))

    est = _vmem_estimate(block_b, in_dim, h1, h2, h3, out_pad)
    vmem_limit = int(min(cap - 8 * _MIB, max(32 * _MIB, est + 8 * _MIB)))

    out = _mlp_pallas_call(
        x.astype(jnp.float32),
        prep["w1"], prep["b1"], prep["w2"], prep["b2"],
        prep["w3"], prep["b3"], prep["w4"], prep["b4"],
        block_b=block_b, vmem_limit_bytes=vmem_limit)
    return out[:, :out_dim]


def init_params(key, input_dim, output_dim, hidden_dim_factor=2,
                dtype=jnp.float32):
    """PyTorch-Linear-style uniform init (+/- 1/sqrt(fan_in)).

    Weights stored transposed to (in_features, out_features); biases as
    (1, out_features) for TPU-friendly 2-D broadcasting.
    """
    hidden_dim1 = hidden_dim_factor * input_dim
    hidden_dim2 = hidden_dim1 // 2
    hidden_dim3 = hidden_dim2 // 2
    dims = [(input_dim, hidden_dim1),
            (hidden_dim1, hidden_dim2),
            (hidden_dim2, hidden_dim3),
            (hidden_dim3, output_dim)]
    params = {}
    for idx, (fan_in, fan_out) in enumerate(dims, start=1):
        key, kw, kb = jax.random.split(key, 3)
        bound = 1.0 / jnp.sqrt(jnp.asarray(fan_in, dtype))
        params[f"w{idx}"] = jax.random.uniform(
            kw, (fan_in, fan_out), dtype, minval=-bound, maxval=bound)
        params[f"b{idx}"] = jax.random.uniform(
            kb, (1, fan_out), dtype, minval=-bound, maxval=bound)
    return params


def mlp_reference(x, params):
    """Pure-JAX reference with the same bf16-operand / f32-accumulate matmuls."""
    def layer(h, w, b, relu=True):
        y = jnp.dot(h.astype(jnp.bfloat16), w.astype(jnp.bfloat16),
                    preferred_element_type=jnp.float32) + b
        return jnp.maximum(y, 0.0) if relu else y
    h = layer(x, params["w1"], params["b1"])
    h = layer(h, params["w2"], params["b2"])
    h = layer(h, params["w3"], params["b3"])
    return layer(h, params["w4"], params["b4"], relu=False)


if __name__ == "__main__":
    key = jax.random.PRNGKey(0)
    k_x, k_p = jax.random.split(key)

    batch = 512          # block_b caps at 128 -> grid=(4,), 2 steps per core
    input_dim = 128
    output_dim = 8

    x = jax.random.normal(k_x, (batch, input_dim), jnp.float32)
    params = init_params(k_p, input_dim, output_dim, hidden_dim_factor=2)

    # One-time weight prep (pad to lane multiples + bf16 cast), reused per call.
    prep, out_dim = prepare_params(params)

    out = mlp_forward(x, prep, out_dim, block_b=512)
    out = jax.block_until_ready(out)

    ref = mlp_reference(x, params)
    assert out.shape == (batch, output_dim), out.shape
    assert jnp.allclose(out, ref, atol=1e-2, rtol=1e-2), (
        "mismatch vs reference, max abs diff = "
        f"{float(jnp.max(jnp.abs(out - ref)))}")

    print("KERNEL_OK")
</pallas_src>

<mosaic_0001>
module attributes {stable_mosaic.version = 11 : i64} {
  func.func @_mlp_kernel(%arg0: i32, %arg1: memref<128x128xf32, #tpu.memory_space<vmem>>, %arg2: memref<128x256xbf16, #tpu.memory_space<vmem>>, %arg3: memref<1x256xf32, #tpu.memory_space<vmem>>, %arg4: memref<256x128xbf16, #tpu.memory_space<vmem>>, %arg5: memref<1x128xf32, #tpu.memory_space<vmem>>, %arg6: memref<128x128xbf16, #tpu.memory_space<vmem>>, %arg7: memref<1x128xf32, #tpu.memory_space<vmem>>, %arg8: memref<128x128xbf16, #tpu.memory_space<vmem>>, %arg9: memref<1x128xf32, #tpu.memory_space<vmem>>, %arg10: memref<128x128xf32, #tpu.memory_space<vmem>>) attributes {dimension_semantics = [#tpu.dimension_semantics<parallel>], iteration_bounds = array<i64: 4>, scalar_prefetch = 0 : i64, scratch_operands = 0 : i64, tpu.core_type = #tpu.core_type<tc>, window_params = [{transform_indices = @transform_0, window_bounds = array<i64: 128, 128>}, {pipeline_mode = #tpu.pipeline_mode<synchronous>, transform_indices = @transform_1, window_bounds = array<i64: 128, 256>}, {pipeline_mode = #tpu.pipeline_mode<synchronous>, transform_indices = @transform_2, window_bounds = array<i64: 1, 256>}, {pipeline_mode = #tpu.pipeline_mode<synchronous>, transform_indices = @transform_3, window_bounds = array<i64: 256, 128>}, {pipeline_mode = #tpu.pipeline_mode<synchronous>, transform_indices = @transform_4, window_bounds = array<i64: 1, 128>}, {pipeline_mode = #tpu.pipeline_mode<synchronous>, transform_indices = @transform_5, window_bounds = array<i64: 128, 128>}, {pipeline_mode = #tpu.pipeline_mode<synchronous>, transform_indices = @transform_6, window_bounds = array<i64: 1, 128>}, {pipeline_mode = #tpu.pipeline_mode<synchronous>, transform_indices = @transform_7, window_bounds = array<i64: 128, 128>}, {pipeline_mode = #tpu.pipeline_mode<synchronous>, transform_indices = @transform_8, window_bounds = array<i64: 1, 128>}, {transform_indices = @transform_9, window_bounds = array<i64: 128, 128>}]} {
    %c0 = arith.constant 0 : index
    %c0_0 = arith.constant 0 : index
    %0 = vector.load %arg1[%c0, %c0_0] : memref<128x128xf32, #tpu.memory_space<vmem>>, vector<128x128xf32>
    %1 = arith.truncf %0 : vector<128x128xf32> to vector<128x128xbf16>
    %c0_1 = arith.constant 0 : index
    %c0_2 = arith.constant 0 : index
    %2 = vector.load %arg2[%c0_1, %c0_2] : memref<128x256xbf16, #tpu.memory_space<vmem>>, vector<128x256xbf16>
    %cst = arith.constant dense<0.000000e+00> : vector<128x256xf32>
    %3 = tpu.matmul %1, %2, %cst {dimension_numbers = #tpu.dot_dimension_numbers<[1], [0], [0], [1], [0, 0, 1, 1], [], []>} : vector<128x128xbf16>, vector<128x256xbf16>, vector<128x256xf32> -> vector<128x256xf32>
    %c0_3 = arith.constant 0 : index
    %c0_4 = arith.constant 0 : index
    %4 = vector.load %arg3[%c0_3, %c0_4] : memref<1x256xf32, #tpu.memory_space<vmem>>, vector<1x256xf32>
    %5 = vector.broadcast %4 : vector<1x256xf32> to vector<128x256xf32>
    %6 = arith.addf %3, %5 : vector<128x256xf32>
    %cst_5 = arith.constant 0.000000e+00 : f32
    %7 = vector.broadcast %cst_5 : f32 to vector<128x256xf32>
    %8 = arith.maximumf %6, %7 : vector<128x256xf32>
    %9 = arith.truncf %8 : vector<128x256xf32> to vector<128x256xbf16>
    %c0_6 = arith.constant 0 : index
    %c0_7 = arith.constant 0 : index
    %10 = vector.load %arg4[%c0_6, %c0_7] : memref<256x128xbf16, #tpu.memory_space<vmem>>, vector<256x128xbf16>
    %cst_8 = arith.constant dense<0.000000e+00> : vector<128x128xf32>
    %11 = tpu.matmul %9, %10, %cst_8 {dimension_numbers = #tpu.dot_dimension_numbers<[1], [0], [0], [1], [0, 0, 1, 1], [], []>} : vector<128x256xbf16>, vector<256x128xbf16>, vector<128x128xf32> -> vector<128x128xf32>
    %c0_9 = arith.constant 0 : index
    %c0_10 = arith.constant 0 : index
    %12 = vector.load %arg5[%c0_9, %c0_10] : memref<1x128xf32, #tpu.memory_space<vmem>>, vector<1x128xf32>
    %13 = vector.broadcast %12 : vector<1x128xf32> to vector<128x128xf32>
    %14 = arith.addf %11, %13 : vector<128x128xf32>
    %cst_11 = arith.constant 0.000000e+00 : f32
    %15 = vector.broadcast %cst_11 : f32 to vector<128x128xf32>
    %16 = arith.maximumf %14, %15 : vector<128x128xf32>
    %17 = arith.truncf %16 : vector<128x128xf32> to vector<128x128xbf16>
    %c0_12 = arith.constant 0 : index
    %c0_13 = arith.constant 0 : index
    %18 = vector.load %arg6[%c0_12, %c0_13] : memref<128x128xbf16, #tpu.memory_space<vmem>>, vector<128x128xbf16>
    %cst_14 = arith.constant dense<0.000000e+00> : vector<128x128xf32>
    %19 = tpu.matmul %17, %18, %cst_14 {dimension_numbers = #tpu.dot_dimension_numbers<[1], [0], [0], [1], [0, 0, 1, 1], [], []>} : vector<128x128xbf16>, vector<128x128xbf16>, vector<128x128xf32> -> vector<128x128xf32>
    %c0_15 = arith.constant 0 : index
    %c0_16 = arith.constant 0 : index
    %20 = vector.load %arg7[%c0_15, %c0_16] : memref<1x128xf32, #tpu.memory_space<vmem>>, vector<1x128xf32>
    %21 = vector.broadcast %20 : vector<1x128xf32> to vector<128x128xf32>
    %22 = arith.addf %19, %21 : vector<128x128xf32>
    %cst_17 = arith.constant 0.000000e+00 : f32
    %23 = vector.broadcast %cst_17 : f32 to vector<128x128xf32>
    %24 = arith.maximumf %22, %23 : vector<128x128xf32>
    %25 = arith.truncf %24 : vector<128x128xf32> to vector<128x128xbf16>
    %c0_18 = arith.constant 0 : index
    %c0_19 = arith.constant 0 : index
    %26 = vector.load %arg8[%c0_18, %c0_19] : memref<128x128xbf16, #tpu.memory_space<vmem>>, vector<128x128xbf16>
    %cst_20 = arith.constant dense<0.000000e+00> : vector<128x128xf32>
    %27 = tpu.matmul %25, %26, %cst_20 {dimension_numbers = #tpu.dot_dimension_numbers<[1], [0], [0], [1], [0, 0, 1, 1], [], []>} : vector<128x128xbf16>, vector<128x128xbf16>, vector<128x128xf32> -> vector<128x128xf32>
    %c0_21 = arith.constant 0 : index
    %c0_22 = arith.constant 0 : index
    %28 = vector.load %arg9[%c0_21, %c0_22] : memref<1x128xf32, #tpu.memory_space<vmem>>, vector<1x128xf32>
    %29 = vector.broadcast %28 : vector<1x128xf32> to vector<128x128xf32>
    %30 = arith.addf %27, %29 : vector<128x128xf32>
    %c0_23 = arith.constant 0 : index
    %c0_24 = arith.constant 0 : index
    %31 = vector.load %arg10[%c0_23, %c0_24] : memref<128x128xf32, #tpu.memory_space<vmem>>, vector<128x128xf32>
    tpu.vector_store %arg10[%c0_23, %c0_24], %30 {strides = array<i32>} : memref<128x128xf32, #tpu.memory_space<vmem>>, vector<128x128xf32>,
    return
  }
  func.func @transform_0(%arg0: i32) -> (i32, i32) {
    %c0_i32 = arith.constant 0 : i32
    %c0_i32_0 = arith.constant 0 : i32
    return %arg0, %c0_i32 : i32, i32
  }
  func.func @transform_1(%arg0: i32) -> (i32, i32) {
    %c0_i32 = arith.constant 0 : i32
    %c0_i32_0 = arith.constant 0 : i32
    %c0_i32_1 = arith.constant 0 : i32
    return %c0_i32, %c0_i32_0 : i32, i32
  }
  func.func @transform_2(%arg0: i32) -> (i32, i32) {
    %c0_i32 = arith.constant 0 : i32
    %c0_i32_0 = arith.constant 0 : i32
    %c0_i32_1 = arith.constant 0 : i32
    return %c0_i32, %c0_i32_0 : i32, i32
  }
  func.func @transform_3(%arg0: i32) -> (i32, i32) {
    %c0_i32 = arith.constant 0 : i32
    %c0_i32_0 = arith.constant 0 : i32
    %c0_i32_1 = arith.constant 0 : i32
    return %c0_i32, %c0_i32_0 : i32, i32
  }
  func.func @transform_4(%arg0: i32) -> (i32, i32) {
    %c0_i32 = arith.constant 0 : i32
    %c0_i32_0 = arith.constant 0 : i32
    %c0_i32_1 = arith.constant 0 : i32
    return %c0_i32, %c0_i32_0 : i32, i32
  }
  func.func @transform_5(%arg0: i32) -> (i32, i32) {
    %c0_i32 = arith.constant 0 : i32
    %c0_i32_0 = arith.constant 0 : i32
    %c0_i32_1 = arith.constant 0 : i32
    return %c0_i32, %c0_i32_0 : i32, i32
  }
  func.func @transform_6(%arg0: i32) -> (i32, i32) {
    %c0_i32 = arith.constant 0 : i32
    %c0_i32_0 = arith.constant 0 : i32
    %c0_i32_1 = arith.constant 0 : i32
    return %c0_i32, %c0_i32_0 : i32, i32
  }
  func.func @transform_7(%arg0: i32) -> (i32, i32) {
    %c0_i32 = arith.constant 0 : i32
    %c0_i32_0 = arith.constant 0 : i32
    %c0_i32_1 = arith.constant 0 : i32
    return %c0_i32, %c0_i32_0 : i32, i32
  }
  func.func @transform_8(%arg0: i32) -> (i32, i32) {
    %c0_i32 = arith.constant 0 : i32
    %c0_i32_0 = arith.constant 0 : i32
    %c0_i32_1 = arith.constant 0 : i32
    return %c0_i32, %c0_i32_0 : i32, i32
  }
  func.func @transform_9(%arg0: i32) -> (i32, i32) {
    %c0_i32 = arith.constant 0 : i32
    %c0_i32_0 = arith.constant 0 : i32
    return %arg0, %c0_i32 : i32, i32
  }
}

</mosaic_0001>

<llo_original>
// kernel: _mlp_pallas_call.1
$region0: #{_mlp_pallas_call.1}
  #allocation0 [shape = 'u32[]', space=smem, size = 0x4, offset = 0x4, fixed_abs, tag = 'smem constant byte address 0x4 - core index']
  #allocation1 [shape = 'u32[144,128]{1,0:T(1,128)}', space=vmem, size = 0x12000, scoped, tag = 'internal scratch']
  %s0 = inlined_call_operand.hbm [shape: f32[512,128], index: 0, kind: input, shape index: {}]
  %s1 = inlined_call_operand.hbm [shape: bf16[128,256], index: 1, kind: input, shape index: {}]
  %s2 = inlined_call_operand.vmem [shape: f32[1,256], index: 2, kind: input, shape index: {}]
  %s3 = inlined_call_operand.hbm [shape: bf16[256,128], index: 3, kind: input, shape index: {}]
  %s4 = inlined_call_operand.vmem [shape: f32[1,128], index: 4, kind: input, shape index: {}]
  %s5 = inlined_call_operand.hbm [shape: bf16[128,128], index: 5, kind: input, shape index: {}]
  %s6 = inlined_call_operand.vmem [shape: f32[1,128], index: 6, kind: input, shape index: {}]
  %s7 = inlined_call_operand.hbm [shape: bf16[128,128], index: 7, kind: input, shape index: {}]
  %s8 = inlined_call_operand.vmem [shape: f32[1,128], index: 8, kind: input, shape index: {}]
  %s9 = inlined_call_operand.hbm [shape: f32[512,128], index: 9, kind: output, shape index: {}]
  %s10 = sld [smem:[#allocation0]]
  $region89: #{_mlp_pallas_call.1} parent=0
    _
  %s12 = ssub.s32 1, %s10
  %s13 = scalar_select 0, %s12, %s10
  $region1: #{_mlp_pallas_call.1} parent=0
    #allocation2 [shape = 'u8[131072]{0}', space=vmem, size = 0x20000, scoped, tag = 'input window, operand 0']
    #allocation3 [shape = 's32[2]{0}', space=sflag, size = 0x8, scoped, tag = 'scoped memory for _mlp_pallas_call.1']
    #allocation4 [shape = 's32[2]{0}', space=sflag, size = 0x8, scoped, tag = 'scoped memory for _mlp_pallas_call.1']
    #allocation5 [shape = 'u8[65536]{0}', space=vmem, size = 0x10000, scoped, tag = 'input window, operand 1, single buffered']
    #allocation6 [shape = 's32[1]{0}', space=sflag, size = 0x4, scoped, tag = 'scoped memory for _mlp_pallas_call.1']
    #allocation7 [shape = 'u8[65536]{0}', space=vmem, size = 0x10000, scoped, tag = 'input window, operand 3, single buffered']
    #allocation8 [shape = 'u8[32768]{0}', space=vmem, size = 0x8000, scoped, tag = 'input window, operand 5, single buffered']
    #allocation9 [shape = 's32[1]{0}', space=sflag, size = 0x4, scoped, tag = 'scoped memory for _mlp_pallas_call.1']
    #allocation10 [shape = 'u8[32768]{0}', space=vmem, size = 0x8000, scoped, tag = 'input window, operand 7, single buffered']
    #allocation11 [shape = 'u8[131072]{0}', space=vmem, size = 0x20000, scoped, tag = 'output window, operand 0']
    %14 = vsyncpa [#allocation3], 0
    %s15 = scalar_lea.sflag [#allocation3], 1
    %16 = vsyncpa %s15, 0
    %17 = vsyncpa [#allocation6], 0
    %18 = vsyncpa [#allocation9], 0
    %19 = vsyncpa [#allocation4], 0
    %s20 = scalar_lea.sflag [#allocation4], 1
    %21 = vsyncpa %s20, 0
    loop: start=0, step=1, limit=6
    $region2: #{_mlp_pallas_call.1} parent=1 // loop_pre_header
      _
    $region3: #{_mlp_pallas_call.1} parent=1 // loop_header
      %s23 = sphi 0, %s27
      %p24 = scmp.ge.s32.totalorder %s23, 6
      %s33 = sphi 0, %s35
      %s36 = sphi 0, %s33
      %s37 = sphi 0, %s36
      %s53 = sphi 0, %s37
      %s57 = sphi 0, %s57
      %s59 = sphi 0, %s57
      %s60 = sphi 0, %s59
      %s74 = sphi 0, %s60
      %s78 = sphi 0, %s78
      %s80 = sphi 0, %s78
      %s81 = sphi 0, %s80
      %s95 = sphi 0, %s81
      %s99 = sphi 0, %s99
      %s101 = sphi 0, %s99
      %s102 = sphi 0, %s101
      %s116 = sphi 0, %s102
      %s120 = sphi 0, %s120
      %s122 = sphi 0, %s120
      %s123 = sphi 0, %s122
      %s137 = sphi 0, %s123
      %s141 = sphi 0, %s141
      %s143 = sphi 0, %s141
      %s144 = sphi 0, %s143
      %s158 = sphi 0, %s144
      %s162 = sphi 0, %s162
      %s164 = sphi 0, %s162
      %s165 = sphi 0, %s164
      %s179 = sphi 0, %s165
      %s183 = sphi 0, %s183
      %s185 = sphi 0, %s183
      %s186 = sphi 0, %s185
      %s200 = sphi 0, %s186
      %s204 = sphi 0, %s204
      %s206 = sphi 0, %s204
      %s207 = sphi 0, %s206
      %s221 = sphi 0, %s207
      %s227 = sphi 0, %s229
      %s230 = sphi 0, %s227
      %s231 = sphi 0, %s230
      %s247 = sphi 0, %s231
    $region4: #{_mlp_pallas_call.1} parent=1 // loop_header_branch
      %26 = sbr.rel (%p24) target = $region8
    $region5: #{_mlp_pallas_call.1} parent=1 // loop_body
      %s28 = ssub.s32 %s23, 1
      %s29 = ssub.s32 %s23, 2
      %s30 = sadd.s32 %s23, 1
      %s31 = ssub.s32 %s23, %s30
      %p32 = scmp.eq.s32.totalorder %s31, 0
      %s34 = sadd.s32 %s33, 1
      %s35 = scalar_select %p32, %s33, %s34
      %p38 = pneg %p32
      %p39 = scmp.eq.s32.totalorder %s23, 3
      %p40 = por %p38, %p39
      %p41 = scmp.ne.s32.totalorder %s33, %s36
      %p42 = scmp.eq.s32.totalorder %s23, 0
      %p43 = por %p41, %p42
      %p44 = scmp.ne.s32.totalorder %s33, %s36
      %p45 = scmp.eq.s32.totalorder %s28, 3
      %p46 = por %p44, %p45
      %p47 = scmp.ne.s32.totalorder %s36, %s37
      %p48 = scmp.eq.s32.totalorder %s28, 0
      %p49 = por %p47, %p48
      %p50 = scmp.ne.s32.totalorder %s36, %s37
      %p51 = scmp.eq.s32.totalorder %s29, 3
      %p52 = por %p50, %p51
      %p54 = scmp.ne.s32.totalorder %s37, %s53
      %p55 = scmp.eq.s32.totalorder %s29, 0
      %p56 = por %p54, %p55
      %s58 = sadd.s32 %s57, 1
      %p61 = scmp.eq.s32.totalorder %s23, 3
      %p62 = scmp.ne.s32.totalorder %s57, %s59
      %p63 = scmp.eq.s32.totalorder %s23, 0
      %p64 = por %p62, %p63
      %p65 = scmp.ne.s32.totalorder %s57, %s59
      %p66 = scmp.eq.s32.totalorder %s28, 3
      %p67 = por %p65, %p66
      %p68 = scmp.ne.s32.totalorder %s59, %s60
      %p69 = scmp.eq.s32.totalorder %s28, 0
      %p70 = por %p68, %p69
      %p71 = scmp.ne.s32.totalorder %s59, %s60
      %p72 = scmp.eq.s32.totalorder %s29, 3
      %p73 = por %p71, %p72
      %p75 = scmp.ne.s32.totalorder %s60, %s74
      %p76 = scmp.eq.s32.totalorder %s29, 0
      %p77 = por %p75, %p76
      %s79 = sadd.s32 %s78, 1
      %p82 = scmp.eq.s32.totalorder %s23, 3
      %p83 = scmp.ne.s32.totalorder %s78, %s80
      %p84 = scmp.eq.s32.totalorder %s23, 0
      %p85 = por %p83, %p84
      %p86 = scmp.ne.s32.totalorder %s78, %s80
      %p87 = scmp.eq.s32.totalorder %s28, 3
      %p88 = por %p86, %p87
      %p89 = scmp.ne.s32.totalorder %s80, %s81
      %p90 = scmp.eq.s32.totalorder %s28, 0
      %p91 = por %p89, %p90
      %p92 = scmp.ne.s32.totalorder %s80, %s81
      %p93 = scmp.eq.s32.totalorder %s29, 3
      %p94 = por %p92, %p93
      %p96 = scmp.ne.s32.totalorder %s81, %s95
      %p97 = scmp.eq.s32.totalorder %s29, 0
      %p98 = por %p96, %p97
      %s100 = sadd.s32 %s99, 1
      %p103 = scmp.eq.s32.totalorder %s23, 3
      %p104 = scmp.ne.s32.totalorder %s99, %s101
      %p105 = scmp.eq.s32.totalorder %s23, 0
      %p106 = por %p104, %p105
      %p107 = scmp.ne.s32.totalorder %s99, %s101
      %p108 = scmp.eq.s32.totalorder %s28, 3
      %p109 = por %p107, %p108
      %p110 = scmp.ne.s32.totalorder %s101, %s102
      %p111 = scmp.eq.s32.totalorder %s28, 0
      %p112 = por %p110, %p111
      %p113 = scmp.ne.s32.totalorder %s101, %s102
      %p114 = scmp.eq.s32.totalorder %s29, 3
      %p115 = por %p113, %p114
      %p117 = scmp.ne.s32.totalorder %s102, %s116
      %p118 = scmp.eq.s32.totalorder %s29, 0
      %p119 = por %p117, %p118
      %s121 = sadd.s32 %s120, 1
      %p124 = scmp.eq.s32.totalorder %s23, 3
      %p125 = scmp.ne.s32.totalorder %s120, %s122
      %p126 = scmp.eq.s32.totalorder %s23, 0
      %p127 = por %p125, %p126
      %p128 = scmp.ne.s32.totalorder %s120, %s122
      %p129 = scmp.eq.s32.totalorder %s28, 3
      %p130 = por %p128, %p129
      %p131 = scmp.ne.s32.totalorder %s122, %s123
      %p132 = scmp.eq.s32.totalorder %s28, 0
      %p133 = por %p131, %p132
      %p134 = scmp.ne.s32.totalorder %s122, %s123
      %p135 = scmp.eq.s32.totalorder %s29, 3
      %p136 = por %p134, %p135
      %p138 = scmp.ne.s32.totalorder %s123, %s137
      %p139 = scmp.eq.s32.totalorder %s29, 0
      %p140 = por %p138, %p139
      %s142 = sadd.s32 %s141, 1
      %p145 = scmp.eq.s32.totalorder %s23, 3
      %p146 = scmp.ne.s32.totalorder %s141, %s143
      %p147 = scmp.eq.s32.totalorder %s23, 0
      %p148 = por %p146, %p147
      %p149 = scmp.ne.s32.totalorder %s141, %s143
      %p150 = scmp.eq.s32.totalorder %s28, 3
      %p151 = por %p149, %p150
      %p152 = scmp.ne.s32.totalorder %s143, %s144
      %p153 = scmp.eq.s32.totalorder %s28, 0
      %p154 = por %p152, %p153
      %p155 = scmp.ne.s32.totalorder %s143, %s144
      %p156 = scmp.eq.s32.totalorder %s29, 3
      %p157 = por %p155, %p156
      %p159 = scmp.ne.s32.totalorder %s144, %s158
      %p160 = scmp.eq.s32.totalorder %s29, 0
      %p161 = por %p159, %p160
      %s163 = sadd.s32 %s162, 1
      %p166 = scmp.eq.s32.totalorder %s23, 3
      %p167 = scmp.ne.s32.totalorder %s162, %s164
      %p168 = scmp.eq.s32.totalorder %s23, 0
      %p169 = por %p167, %p168
      %p170 = scmp.ne.s32.totalorder %s162, %s164
      %p171 = scmp.eq.s32.totalorder %s28, 3
      %p172 = por %p170, %p171
      %p173 = scmp.ne.s32.totalorder %s164, %s165
      %p174 = scmp.eq.s32.totalorder %s28, 0
      %p175 = por %p173, %p174
      %p176 = scmp.ne.s32.totalorder %s164, %s165
      %p177 = scmp.eq.s32.totalorder %s29, 3
      %p178 = por %p176, %p177
      %p180 = scmp.ne.s32.totalorder %s165, %s179
      %p181 = scmp.eq.s32.totalorder %s29, 0
      %p182 = por %p180, %p181
      %s184 = sadd.s32 %s183, 1
      %p187 = scmp.eq.s32.totalorder %s23, 3
      %p188 = scmp.ne.s32.totalorder %s183, %s185
      %p189 = scmp.eq.s32.totalorder %s23, 0
      %p190 = por %p188, %p189
      %p191 = scmp.ne.s32.totalorder %s183, %s185
      %p192 = scmp.eq.s32.totalorder %s28, 3
      %p193 = por %p191, %p192
      %p194 = scmp.ne.s32.totalorder %s185, %s186
      %p195 = scmp.eq.s32.totalorder %s28, 0
      %p196 = por %p194, %p195
      %p197 = scmp.ne.s32.totalorder %s185, %s186
      %p198 = scmp.eq.s32.totalorder %s29, 3
      %p199 = por %p197, %p198
      %p201 = scmp.ne.s32.totalorder %s186, %s200
      %p202 = scmp.eq.s32.totalorder %s29, 0
      %p203 = por %p201, %p202
      %s205 = sadd.s32 %s204, 1
      %p208 = scmp.eq.s32.totalorder %s23, 3
      %p209 = scmp.ne.s32.totalorder %s204, %s206
      %p210 = scmp.eq.s32.totalorder %s23, 0
      %p211 = por %p209, %p210
      %p212 = scmp.ne.s32.totalorder %s204, %s206
      %p213 = scmp.eq.s32.totalorder %s28, 3
      %p214 = por %p212, %p213
      %p215 = scmp.ne.s32.totalorder %s206, %s207
      %p216 = scmp.eq.s32.totalorder %s28, 0
      %p217 = por %p215, %p216
      %p218 = scmp.ne.s32.totalorder %s206, %s207
      %p219 = scmp.eq.s32.totalorder %s29, 3
      %p220 = por %p218, %p219
      %p222 = scmp.ne.s32.totalorder %s207, %s221
      %p223 = scmp.eq.s32.totalorder %s29, 0
      %p224 = por %p222, %p223
      %s225 = ssub.s32 %s23, %s30
      %p226 = scmp.eq.s32.totalorder %s225, 0
      %s228 = sadd.s32 %s227, 1
      %s229 = scalar_select %p226, %s227, %s228
      %p232 = pneg %p226
      %p233 = scmp.eq.s32.totalorder %s23, 3
      %p234 = por %p232, %p233
      %p235 = scmp.ne.s32.totalorder %s227, %s230
      %p236 = scmp.eq.s32.totalorder %s23, 0
      %p237 = por %p235, %p236
      %p238 = scmp.ne.s32.totalorder %s227, %s230
      %p239 = scmp.eq.s32.totalorder %s28, 3
      %p240 = por %p238, %p239
      %p241 = scmp.ne.s32.totalorder %s230, %s231
      %p242 = scmp.eq.s32.totalorder %s28, 0
      %p243 = por %p241, %p242
      %p244 = scmp.ne.s32.totalorder %s230, %s231
      %p245 = scmp.eq.s32.totalorder %s29, 3
      %p246 = por %p244, %p245
      %p248 = scmp.ne.s32.totalorder %s231, %s247
      %p249 = scmp.eq.s32.totalorder %s29, 0
      %p250 = por %p248, %p249
      %p251 = scmp.le.s32.totalorder 1, %s23
      %p252 = scmp.lt.s32.totalorder %s23, 5
      %p253 = pnand %p251, %p252
      %p254 = pneg %p253
      // Predicated region
      $region9: #{_mlp_pallas_call.1} parent=5 // pred_check
        _
      $region10: #{_mlp_pallas_call.1} parent=5 // pred_check_branch
        %256 = sbr.rel (%p253) target = $region12
      $region11: #{_mlp_pallas_call.1} parent=5 // pred_region
        %s257 = ssub.s32 %s23, 1
        // Predicated region
        $region13: #{_mlp_pallas_call.1} parent=11 // pred_check
          %p258 = pneg %p70
        $region14: #{_mlp_pallas_call.1} parent=11 // pred_check_branch
          %260 = sbr.rel (%p258) target = $region16
        $region15: #{_mlp_pallas_call.1} parent=11 // pred_region
          %s262 = ssub.s32 2048, 2048
          %263 = vsyncadd [#allocation6], %s262
          %s264 = sshll.u32 [#allocation5], 4
          %s265 = int_to_ptr.vmem [resolvable:$true] %s264
          %270 = dma.hbm_to_vmem [thread:$0]  %s1, 2048, %s265, [#allocation6], 128, 128, 8
        $region16: #{_mlp_pallas_call.1} parent=11 // pred_fallthru
          _
        // Predicated region
        $region17: #{_mlp_pallas_call.1} parent=11 // pred_check
          %p271 = pneg %p91
        $region18: #{_mlp_pallas_call.1} parent=11 // pred_check_branch
          %273 = sbr.rel (%p271) target = $region20
        $region19: #{_mlp_pallas_call.1} parent=11 // pred_region
          _
        $region20: #{_mlp_pallas_call.1} parent=11 // pred_fallthru
          _
        // Predicated region
        $region21: #{_mlp_pallas_call.1} parent=11 // pred_check
          %p274 = pneg %p112
        $region22: #{_mlp_pallas_call.1} parent=11 // pred_check_branch
          %276 = sbr.rel (%p274) target = $region24
        $region23: #{_mlp_pallas_call.1} parent=11 // pred_region
          %s278 = ssub.s32 2048, 2048
          %279 = vsyncadd [#allocation6], %s278
          %s280 = sshll.u32 [#allocation7], 4
          %s281 = int_to_ptr.vmem [resolvable:$true] %s280
          %286 = dma.hbm_to_vmem [thread:$0]  %s3, 2048, %s281, [#allocation6], 64, 64, 4
        $region24: #{_mlp_pallas_call.1} parent=11 // pred_fallthru
          _
        // Predicated region
        $region25: #{_mlp_pallas_call.1} parent=11 // pred_check
          %p287 = pneg %p133
        $region26: #{_mlp_pallas_call.1} parent=11 // pred_check_branch
          %289 = sbr.rel (%p287) target = $region28
        $region27: #{_mlp_pallas_call.1} parent=11 // pred_region
          _
        $region28: #{_mlp_pallas_call.1} parent=11 // pred_fallthru
          _
        // Predicated region
        $region29: #{_mlp_pallas_call.1} parent=11 // pred_check
          %p290 = pneg %p154
        $region30: #{_mlp_pallas_call.1} parent=11 // pred_check_branch
          %292 = sbr.rel (%p290) target = $region32
        $region31: #{_mlp_pallas_call.1} parent=11 // pred_region
          %s294 = ssub.s32 1024, 1024
          %295 = vsyncadd [#allocation9], %s294
          %s296 = sshll.u32 [#allocation8], 4
          %s297 = int_to_ptr.vmem [resolvable:$true] %s296
          %302 = dma.hbm_to_vmem [thread:$0]  %s5, 1024, %s297, [#allocation9], 64, 64, 4
        $region32: #{_mlp_pallas_call.1} parent=11 // pred_fallthru
          _
        // Predicated region
        $region33: #{_mlp_pallas_call.1} parent=11 // pred_check
          %p303 = pneg %p175
        $region34: #{_mlp_pallas_call.1} parent=11 // pred_check_branch
          %305 = sbr.rel (%p303) target = $region36
        $region35: #{_mlp_pallas_call.1} parent=11 // pred_region
          _
        $region36: #{_mlp_pallas_call.1} parent=11 // pred_fallthru
          _
        // Predicated region
        $region37: #{_mlp_pallas_call.1} parent=11 // pred_check
          %p306 = pneg %p196
        $region38: #{_mlp_pallas_call.1} parent=11 // pred_check_branch
          %308 = sbr.rel (%p306) target = $region40
        $region39: #{_mlp_pallas_call.1} parent=11 // pred_region
          %s310 = ssub.s32 1024, 1024
          %311 = vsyncadd [#allocation9], %s310
          %s312 = sshll.u32 [#allocation10], 4
          %s313 = int_to_ptr.vmem [resolvable:$true] %s312
          %318 = dma.hbm_to_vmem [thread:$0]  %s7, 1024, %s313, [#allocation9], 64, 64, 4
        $region40: #{_mlp_pallas_call.1} parent=11 // pred_fallthru
          _
        // Predicated region
        $region41: #{_mlp_pallas_call.1} parent=11 // pred_check
          %p319 = pneg %p217
        $region42: #{_mlp_pallas_call.1} parent=11 // pred_check_branch
          %321 = sbr.rel (%p319) target = $region44
        $region43: #{_mlp_pallas_call.1} parent=11 // pred_region
          _
        $region44: #{_mlp_pallas_call.1} parent=11 // pred_fallthru
          _
      $region12: #{_mlp_pallas_call.1} parent=5 // pred_fallthru
        _
      %p322 = scmp.lt.s32.totalorder %s23, 4
      // Predicated region
      $region45: #{_mlp_pallas_call.1} parent=5 // pred_check
        %p323 = pneg %p322
      $region46: #{_mlp_pallas_call.1} parent=5 // pred_check_branch
        %325 = sbr.rel (%p323) target = $region48
      $region47: #{_mlp_pallas_call.1} parent=5 // pred_region
        // Predicated region
        $region49: #{_mlp_pallas_call.1} parent=47 // pred_check
          %p326 = pneg %p43
        $region50: #{_mlp_pallas_call.1} parent=47 // pred_check_branch
          %328 = sbr.rel (%p326) target = $region52
        $region51: #{_mlp_pallas_call.1} parent=47 // pred_region
          %s329 = sand.u32 %s33, 1
          %s330 = scalar_lea.sflag [#allocation3], %s329
          %s331 = sand.u32 %s33, 1
          %s332 = smul.addr %s331, 128
          %s333 = scalar_lea.vmem [#allocation2], %s332
          %s334 = smul.u32 16, %s23
          %s336 = ssub.s32 2048, 2048
          %337 = vsyncadd %s330, %s336
          %s338 = smul.addr %s334, 128
          %s339 = scalar_lea.hbm %s0, %s338
          %s340 = sshll.u32 %s333, 4
          %s341 = int_to_ptr.vmem [resolvable:$true] %s340
          %346 = dma.hbm_to_vmem [thread:$0]  %s339, 2048, %s341, %s330, 128, 128, 8
        $region52: #{_mlp_pallas_call.1} parent=47 // pred_fallthru
          _
      $region48: #{_mlp_pallas_call.1} parent=5 // pred_fallthru
        _
      %p347 = scmp.le.s32.totalorder 1, %s23
      %p348 = scmp.lt.s32.totalorder %s23, 5
      %p349 = pnand %p347, %p348
      %p350 = pneg %p349
      // Predicated region
      $region53: #{_mlp_pallas_call.1} parent=5 // pred_check
        _
      $region54: #{_mlp_pallas_call.1} parent=5 // pred_check_branch
        %352 = sbr.rel (%p349) target = $region56
      $region55: #{_mlp_pallas_call.1} parent=5 // pred_region
        %s353 = ssub.s32 %s23, 1
        %s354 = sand.u32 %s36, 1
        %s355 = scalar_lea.sflag [#allocation3], %s354
        %s356 = sand.u32 %s36, 1
        %s357 = smul.addr %s356, 128
        %s358 = scalar_lea.vmem [#allocation2], %s357
        // Predicated region
        $region57: #{_mlp_pallas_call.1} parent=55 // pred_check
          %p359 = pneg %p49
        $region58: #{_mlp_pallas_call.1} parent=55 // pred_check_branch
          %361 = sbr.rel (%p359) target = $region60
        $region59: #{_mlp_pallas_call.1} parent=55 // pred_region
          %362 = dma.done %s355, 2048
        $region60: #{_mlp_pallas_call.1} parent=55 // pred_fallthru
          _
        // Predicated region
        $region61: #{_mlp_pallas_call.1} parent=55 // pred_check
          %p363 = pneg %p70
        $region62: #{_mlp_pallas_call.1} parent=55 // pred_check_branch
          %365 = sbr.rel (%p363) target = $region64
        $region63: #{_mlp_pallas_call.1} parent=55 // pred_region
          %366 = dma.done [#allocation6], 2048
        $region64: #{_mlp_pallas_call.1} parent=55 // pred_fallthru
          _
        // Predicated region
        $region65: #{_mlp_pallas_call.1} parent=55 // pred_check
          %p367 = pneg %p112
        $region66: #{_mlp_pallas_call.1} parent=55 // pred_check_branch
          %369 = sbr.rel (%p367) target = $region68
        $region67: #{_mlp_pallas_call.1} parent=55 // pred_region
          %370 = dma.done [#allocation6], 2048
        $region68: #{_mlp_pallas_call.1} parent=55 // pred_fallthru
          _
        // Predicated region
        $region69: #{_mlp_pallas_call.1} parent=55 // pred_check
          %p371 = pneg %p154
        $region70: #{_mlp_pallas_call.1} parent=55 // pred_check_branch
          %373 = sbr.rel (%p371) target = $region72
        $region71: #{_mlp_pallas_call.1} parent=55 // pred_region
          %374 = dma.done [#allocation9], 1024
        $region72: #{_mlp_pallas_call.1} parent=55 // pred_fallthru
          _
        // Predicated region
        $region73: #{_mlp_pallas_call.1} parent=55 // pred_check
          %p375 = pneg %p196
        $region74: #{_mlp_pallas_call.1} parent=55 // pred_check_branch
          %377 = sbr.rel (%p375) target = $region76
        $region75: #{_mlp_pallas_call.1} parent=55 // pred_region
          %378 = dma.done [#allocation9], 1024
        $region76: #{_mlp_pallas_call.1} parent=55 // pred_fallthru
          _
        %s379 = sand.u32 %s36, 1
        %s380 = scalar_lea.sflag [#allocation3], %s379
        %s381 = sand.u32 %s36, 1
        %s382 = smul.addr %s381, 128
        %s383 = scalar_lea.vmem [#allocation2], %s382
        %p384 = pneg %p49
        %p385 = pneg %p46
        %p386 = pneg %p70
        %p387 = pneg %p67
        %p388 = pneg %p91
        %p389 = pneg %p88
        %p390 = pneg %p112
        %p391 = pneg %p109
        %p392 = pneg %p133
        %p393 = pneg %p130
        %p394 = pneg %p154
        %p395 = pneg %p151
        %p396 = pneg %p175
        %p397 = pneg %p172
        %p398 = pneg %p196
        %p399 = pneg %p193
        %p400 = pneg %p217
        %p401 = pneg %p214
        %p402 = pneg %p243
        %p403 = pneg %p240
        %s404 = sand.u32 %s230, 1
        %s405 = scalar_lea.sflag [#allocation4], %s404
        %s406 = sand.u32 %s230, 1
        %s407 = smul.addr %s406, 128
        %s408 = scalar_lea.vmem [#allocation11], %s407
        %s409 = smul.u32 16, %s28
        %s410 = smul.u32 16, %s28
        %v412 = vld [vmem:[%s358] sm:$0xff]
        %v413 = vld [vmem:[%s358 + $0x8] sm:$0xff]
        %v414 = vld [vmem:[%s358 + $0x10] sm:$0xff]
        %v415 = vld [vmem:[%s358 + $0x18] sm:$0xff]
        %v416 = vld [vmem:[%s358 + $0x20] sm:$0xff]
        %v417 = vld [vmem:[%s358 + $0x28] sm:$0xff]
        %v418 = vld [vmem:[%s358 + $0x30] sm:$0xff]
        %v419 = vld [vmem:[%s358 + $0x38] sm:$0xff]
        %v420 = vld [vmem:[%s358 + $0x40] sm:$0xff]
        %v421 = vld [vmem:[%s358 + $0x48] sm:$0xff]
        %v422 = vld [vmem:[%s358 + $0x50] sm:$0xff]
        %v423 = vld [vmem:[%s358 + $0x58] sm:$0xff]
        %v424 = vld [vmem:[%s358 + $0x60] sm:$0xff]
        %v425 = vld [vmem:[%s358 + $0x68] sm:$0xff]
        %v426 = vld [vmem:[%s358 + $0x70] sm:$0xff]
        %v427 = vld [vmem:[%s358 + $0x78] sm:$0xff]
        %v428 = vpack.c.bf16 %v413, %v412
        %v429 = vpack.c.bf16 %v415, %v414
        %v430 = vpack.c.bf16 %v417, %v416
        %v431 = vpack.c.bf16 %v419, %v418
        %v432 = vpack.c.bf16 %v421, %v420
        %v433 = vpack.c.bf16 %v423, %v422
        %v434 = vpack.c.bf16 %v425, %v424
        %v435 = vpack.c.bf16 %v427, %v426
        %v436 = vld [vmem:[#allocation5] sm:$0xff]
        %v437 = vld [vmem:[#allocation5 + $0x8] sm:$0xff]
        %v438 = vld [vmem:[#allocation5 + $0x10] sm:$0xff]
        %v439 = vld [vmem:[#allocation5 + $0x18] sm:$0xff]
        %v440 = vld [vmem:[#allocation5 + $0x20] sm:$0xff]
        %v441 = vld [vmem:[#allocation5 + $0x28] sm:$0xff]
        %v442 = vld [vmem:[#allocation5 + $0x30] sm:$0xff]
        %v443 = vld [vmem:[#allocation5 + $0x38] sm:$0xff]
        %v444 = vld [vmem:[#allocation5 + $0x40] sm:$0xff]
        %v445 = vld [vmem:[#allocation5 + $0x48] sm:$0xff]
        %v446 = vld [vmem:[#allocation5 + $0x50] sm:$0xff]
        %v447 = vld [vmem:[#allocation5 + $0x58] sm:$0xff]
        %v448 = vld [vmem:[#allocation5 + $0x60] sm:$0xff]
        %v449 = vld [vmem:[#allocation5 + $0x68] sm:$0xff]
        %v450 = vld [vmem:[#allocation5 + $0x70] sm:$0xff]
        %v451 = vld [vmem:[#allocation5 + $0x78] sm:$0xff]
        %v452 = vld [vmem:[%s2] sm:$0x3]
        %v454 = vlaneseq
        %v455 = vshrl.u32 %v454, 7
        %v456 = vsub.s32 0, %v455
        %v457 = vrot.slane %v452, %v456
        %v458 = vlaneseq
        %v459 = vshrl.u32 %v458, 7
        %v460 = vsub.s32 1, %v459
        %v461 = vrot.slane %v452, %v460
        %v480 = vunpack.c.l.b16 %v436
        %v481 = vunpack.c.h.b16 %v436
        %v482 = vunpack.c.l.b16 %v437
        %v483 = vunpack.c.h.b16 %v437
        %v484 = vunpack.c.l.b16 %v438
        %v485 = vunpack.c.h.b16 %v438
        %v486 = vunpack.c.l.b16 %v439
        %v487 = vunpack.c.h.b16 %v439
        %v488 = vunpack.c.l.b16 %v440
        %v489 = vunpack.c.h.b16 %v440
        %v490 = vunpack.c.l.b16 %v441
        %v491 = vunpack.c.h.b16 %v441
        %v492 = vunpack.c.l.b16 %v442
        %v493 = vunpack.c.h.b16 %v442
        %v494 = vunpack.c.l.b16 %v443
        %v495 = vunpack.c.h.b16 %v443
        %v496 = vunpack.c.l.b16 %v444
        %v497 = vunpack.c.h.b16 %v444
        %v498 = vunpack.c.l.b16 %v445
        %v499 = vunpack.c.h.b16 %v445
        %v500 = vunpack.c.l.b16 %v446
        %v501 = vunpack.c.h.b16 %v446
        %v502 = vunpack.c.l.b16 %v447
        %v503 = vunpack.c.h.b16 %v447
        %v504 = vunpack.c.l.b16 %v448
        %v505 = vunpack.c.h.b16 %v448
        %v506 = vunpack.c.l.b16 %v449
        %v507 = vunpack.c.h.b16 %v449
        %v508 = vunpack.c.l.b16 %v450
        %v509 = vunpack.c.h.b16 %v450
        %v510 = vunpack.c.l.b16 %v451
        %v511 = vunpack.c.h.b16 %v451
        %v512 = vpack.c.b16 %v482, %v480
        %v513 = vpack.c.b16 %v483, %v481
        %v514 = vpack.c.b16 %v486, %v484
        %v515 = vpack.c.b16 %v487, %v485
        %v516 = vpack.c.b16 %v490, %v488
        %v517 = vpack.c.b16 %v491, %v489
        %v518 = vpack.c.b16 %v494, %v492
        %v519 = vpack.c.b16 %v495, %v493
        %v520 = vpack.c.b16 %v498, %v496
        %v521 = vpack.c.b16 %v499, %v497
        %v522 = vpack.c.b16 %v502, %v500
        %v523 = vpack.c.b16 %v503, %v501
        %v524 = vpack.c.b16 %v506, %v504
        %v525 = vpack.c.b16 %v507, %v505
        %v526 = vpack.c.b16 %v510, %v508
        %v527 = vpack.c.b16 %v511, %v509
        %544 = vmatprep.subr.bf16.mxu0 %v513
        %545 = vmatpush1.bf16.msra.mxu0 %v512
        %546 = vmatprep.subr.bf16.mxu0 %v515
        %547 = vmatpush1.bf16.msra.mxu0 %v514
        %548 = vmatprep.subr.bf16.mxu0 %v517
        %549 = vmatpush1.bf16.msra.mxu0 %v516
        %550 = vmatprep.subr.bf16.mxu0 %v519
        %551 = vmatpush1.bf16.msra.mxu0 %v518
        %552 = vmatprep.subr.bf16.mxu0 %v521
        %553 = vmatpush1.bf16.msra.mxu0 %v520
        %554 = vmatprep.subr.bf16.mxu0 %v523
        %555 = vmatpush1.bf16.msra.mxu0 %v522
        %556 = vmatprep.subr.bf16.mxu0 %v525
        %557 = vmatpush1.bf16.msra.mxu0 %v524
        %558 = vmatprep.subr.bf16.mxu0 %v527
        %559 = vmatpush1.bf16.msra.mxu0 %v526
        %560 = vmatprep.subr.bf16.mxu0 0
        %561 = vmatpush1.bf16.msra.mxu0 0
        %562 = vmatprep.subr.bf16.mxu0 0
        %563 = vmatpush1.bf16.msra.mxu0 0
        %564 = vmatprep.subr.bf16.mxu0 0
        %565 = vmatpush1.bf16.msra.mxu0 0
        %566 = vmatprep.subr.bf16.mxu0 0
        %567 = vmatpush1.bf16.msra.mxu0 0
        %568 = vmatprep.subr.bf16.mxu0 0
        %569 = vmatpush1.bf16.msra.mxu0 0
        %570 = vmatprep.subr.bf16.mxu0 0
        %571 = vmatpush1.bf16.msra.mxu0 0
        %572 = vmatprep.subr.bf16.mxu0 0
        %573 = vmatpush1.bf16.msra.mxu0 0
        %574 = vmatprep.subr.bf16.mxu0 0
        %575 = vmatpush1.bf16.msra.mxu0 0
        %576 = vmatprep.mubr.bf16.mxu0 0
        %577 = vmatmul.mubr.bf16.gmra.mrb[0].mxu0 %v428
        %v578 = vpop.f32.mrb[0].mxu0
        %v579 = vadd.f32 %v457, %v578
        %v580 = vpop.f32.mrb[0].mxu0
        %v581 = vadd.f32 %v461, %v580
        %v582 = vpop.f32.mrb[0].mxu0
        %v583 = vadd.f32 %v457, %v582
        %v584 = vpop.f32.mrb[0].mxu0
        %v585 = vadd.f32 %v461, %v584
        %586 = vmatprep.mubr.bf16.mxu0 0
        %587 = vmatmul.mubr.bf16.gmra.mrb[0].mxu0 %v429
        %v588 = vpop.f32.mrb[0].mxu0
        %v589 = vadd.f32 %v457, %v588
        %v590 = vpop.f32.mrb[0].mxu0
        %v591 = vadd.f32 %v461, %v590
        %v592 = vpop.f32.mrb[0].mxu0
        %v593 = vadd.f32 %v457, %v592
        %v594 = vpop.f32.mrb[0].mxu0
        %v595 = vadd.f32 %v461, %v594
        %596 = vmatprep.mubr.bf16.mxu0 0
        %597 = vmatmul.mubr.bf16.gmra.mrb[0].mxu0 %v430
        %v598 = vpop.f32.mrb[0].mxu0
        %v599 = vadd.f32 %v457, %v598
        %v600 = vpop.f32.mrb[0].mxu0
        %v601 = vadd.f32 %v461, %v600
        %v602 = vpop.f32.mrb[0].mxu0
        %v603 = vadd.f32 %v457, %v602
        %v604 = vpop.f32.mrb[0].mxu0
        %v605 = vadd.f32 %v461, %v604
        %606 = vmatprep.mubr.bf16.mxu0 0
        %607 = vmatmul.mubr.bf16.gmra.mrb[0].mxu0 %v431
        %v608 = vpop.f32.mrb[0].mxu0
        %v609 = vadd.f32 %v457, %v608
        %v610 = vpop.f32.mrb[0].mxu0
        %v611 = vadd.f32 %v461, %v610
        %v612 = vpop.f32.mrb[0].mxu0
        %v613 = vadd.f32 %v457, %v612
        %v614 = vpop.f32.mrb[0].mxu0
        %v615 = vadd.f32 %v461, %v614
        %616 = vmatprep.mubr.bf16.mxu0 0
        %617 = vmatmul.mubr.bf16.gmra.mrb[0].mxu0 %v432
        %v618 = vpop.f32.mrb[0].mxu0
        %v619 = vadd.f32 %v457, %v618
        %v620 = vpop.f32.mrb[0].mxu0
        %v621 = vadd.f32 %v461, %v620
        %v622 = vpop.f32.mrb[0].mxu0
        %v623 = vadd.f32 %v457, %v622
        %v624 = vpop.f32.mrb[0].mxu0
        %v625 = vadd.f32 %v461, %v624
        %626 = vmatprep.mubr.bf16.mxu0 0
        %627 = vmatmul.mubr.bf16.gmra.mrb[0].mxu0 %v433
        %v628 = vpop.f32.mrb[0].mxu0
        %v629 = vadd.f32 %v457, %v628
        %v630 = vpop.f32.mrb[0].mxu0
        %v631 = vadd.f32 %v461, %v630
        %v632 = vpop.f32.mrb[0].mxu0
        %v633 = vadd.f32 %v457, %v632
        %v634 = vpop.f32.mrb[0].mxu0
        %v635 = vadd.f32 %v461, %v634
        %636 = vmatprep.mubr.bf16.mxu0 0
        %637 = vmatmul.mubr.bf16.gmra.mrb[0].mxu0 %v434
        %v638 = vpop.f32.mrb[0].mxu0
        %v639 = vadd.f32 %v457, %v638
        %v640 = vpop.f32.mrb[0].mxu0
        %v641 = vadd.f32 %v461, %v640
        %v642 = vpop.f32.mrb[0].mxu0
        %v643 = vadd.f32 %v457, %v642
        %v644 = vpop.f32.mrb[0].mxu0
        %v645 = vadd.f32 %v461, %v644
        %646 = vmatprep.mubr.bf16.mxu0 0
        %647 = vmatmul.mubr.bf16.gmra.mrb[0].mxu0 %v435
        %v648 = vpop.f32.mrb[0].mxu0
        %v649 = vadd.f32 %v457, %v648
        %v650 = vpop.f32.mrb[0].mxu0
        %v651 = vadd.f32 %v461, %v650
        %v652 = vpop.f32.mrb[0].mxu0
        %v653 = vadd.f32 %v457, %v652
        %v654 = vpop.f32.mrb[0].mxu0
        %v655 = vadd.f32 %v461, %v654
        %656 = vdwg.mxu0
        %v657 = vmax.f32 %v579, 0.0
        %v658 = vmax.f32 %v581, 0.0
        %v659 = vmax.f32 %v583, 0.0
        %v660 = vmax.f32 %v585, 0.0
        %v661 = vmax.f32 %v589, 0.0
        %v662 = vmax.f32 %v591, 0.0
        %v663 = vmax.f32 %v593, 0.0
        %v664 = vmax.f32 %v595, 0.0
        %v665 = vmax.f32 %v599, 0.0
        %v666 = vmax.f32 %v601, 0.0
        %v667 = vmax.f32 %v603, 0.0
        %v668 = vmax.f32 %v605, 0.0
        %v669 = vmax.f32 %v609, 0.0
        %v670 = vmax.f32 %v611, 0.0
        %v671 = vmax.f32 %v613, 0.0
        %v672 = vmax.f32 %v615, 0.0
        %v673 = vmax.f32 %v619, 0.0
        %v674 = vmax.f32 %v621, 0.0
        %v675 = vmax.f32 %v623, 0.0
        %v676 = vmax.f32 %v625, 0.0
        %v677 = vmax.f32 %v629, 0.0
        %v678 = vmax.f32 %v631, 0.0
        %v679 = vmax.f32 %v633, 0.0
        %v680 = vmax.f32 %v635, 0.0
        %v681 = vmax.f32 %v639, 0.0
        %v682 = vmax.f32 %v641, 0.0
        %v683 = vmax.f32 %v643, 0.0
        %v684 = vmax.f32 %v645, 0.0
        %v685 = vmax.f32 %v649, 0.0
        %v686 = vmax.f32 %v651, 0.0
        %v687 = vmax.f32 %v653, 0.0
        %v688 = vmax.f32 %v655, 0.0
        %v689 = vpack.c.bf16 %v659, %v657
        %v690 = vpack.c.bf16 %v660, %v658
        %v691 = vpack.c.bf16 %v663, %v661
        %v692 = vpack.c.bf16 %v664, %v662
        %v693 = vpack.c.bf16 %v667, %v665
        %v694 = vpack.c.bf16 %v668, %v666
        %v695 = vpack.c.bf16 %v671, %v669
        %v696 = vpack.c.bf16 %v672, %v670
        %v697 = vpack.c.bf16 %v675, %v673
        %v698 = vpack.c.bf16 %v676, %v674
        %v699 = vpack.c.bf16 %v679, %v677
        %v700 = vpack.c.bf16 %v680, %v678
        %v701 = vpack.c.bf16 %v683, %v681
        %v702 = vpack.c.bf16 %v684, %v682
        %v703 = vpack.c.bf16 %v687, %v685
        %v704 = vpack.c.bf16 %v688, %v686
        %v705 = vld [vmem:[#allocation7] sm:$0xf]
        %v706 = vld [vmem:[#allocation7 + $0x4] sm:$0xf]
        %v707 = vld [vmem:[#allocation7 + $0x8] sm:$0xf]
        %v708 = vld [vmem:[#allocation7 + $0xc] sm:$0xf]
        %v709 = vld [vmem:[#allocation7 + $0x10] sm:$0xf]
        %v710 = vld [vmem:[#allocation7 + $0x14] sm:$0xf]
        %v711 = vld [vmem:[#allocation7 + $0x18] sm:$0xf]
        %v712 = vld [vmem:[#allocation7 + $0x1c] sm:$0xf]
        %v713 = vld [vmem:[#allocation7 + $0x20] sm:$0xf]
        %v714 = vld [vmem:[#allocation7 + $0x24] sm:$0xf]
        %v715 = vld [vmem:[#allocation7 + $0x28] sm:$0xf]
        %v716 = vld [vmem:[#allocation7 + $0x2c] sm:$0xf]
        %v717 = vld [vmem:[#allocation7 + $0x30] sm:$0xf]
        %v718 = vld [vmem:[#allocation7 + $0x34] sm:$0xf]
        %v719 = vld [vmem:[#allocation7 + $0x38] sm:$0xf]
        %v720 = vld [vmem:[#allocation7 + $0x3c] sm:$0xf]
        %v721 = vld [vmem:[#allocation7 + $0x40] sm:$0xf]
        %v722 = vld [vmem:[#allocation7 + $0x44] sm:$0xf]
        %v723 = vld [vmem:[#allocation7 + $0x48] sm:$0xf]
        %v724 = vld [vmem:[#allocation7 + $0x4c] sm:$0xf]
        %v725 = vld [vmem:[#allocation7 + $0x50] sm:$0xf]
        %v726 = vld [vmem:[#allocation7 + $0x54] sm:$0xf]
        %v727 = vld [vmem:[#allocation7 + $0x58] sm:$0xf]
        %v728 = vld [vmem:[#allocation7 + $0x5c] sm:$0xf]
        %v729 = vld [vmem:[#allocation7 + $0x60] sm:$0xf]
        %v730 = vld [vmem:[#allocation7 + $0x64] sm:$0xf]
        %v731 = vld [vmem:[#allocation7 + $0x68] sm:$0xf]
        %v732 = vld [vmem:[#allocation7 + $0x6c] sm:$0xf]
        %v733 = vld [vmem:[#allocation7 + $0x70] sm:$0xf]
        %v734 = vld [vmem:[#allocation7 + $0x74] sm:$0xf]
        %v735 = vld [vmem:[#allocation7 + $0x78] sm:$0xf]
        %v736 = vld [vmem:[#allocation7 + $0x7c] sm:$0xf]
        %v737 = vld [vmem:[%s4] sm:$0x1]
        %v739 = vlaneseq
        %v740 = vshrl.u32 %v739, 7
        %v741 = vsub.s32 0, %v740
        %v742 = vrot.slane %v737, %v741
        %v776 = vunpack.c.l.b16 %v705
        %v777 = vunpack.c.l.b16 %v706
        %v778 = vunpack.c.l.b16 %v707
        %v779 = vunpack.c.l.b16 %v708
        %v780 = vunpack.c.l.b16 %v709
        %v781 = vunpack.c.l.b16 %v710
        %v782 = vunpack.c.l.b16 %v711
        %v783 = vunpack.c.l.b16 %v712
        %v784 = vunpack.c.l.b16 %v713
        %v785 = vunpack.c.l.b16 %v714
        %v786 = vunpack.c.l.b16 %v715
        %v787 = vunpack.c.l.b16 %v716
        %v788 = vunpack.c.l.b16 %v717
        %v789 = vunpack.c.l.b16 %v718
        %v790 = vunpack.c.l.b16 %v719
        %v791 = vunpack.c.l.b16 %v720
        %v792 = vunpack.c.l.b16 %v721
        %v793 = vunpack.c.l.b16 %v722
        %v794 = vunpack.c.l.b16 %v723
        %v795 = vunpack.c.l.b16 %v724
        %v796 = vunpack.c.l.b16 %v725
        %v797 = vunpack.c.l.b16 %v726
        %v798 = vunpack.c.l.b16 %v727
        %v799 = vunpack.c.l.b16 %v728
        %v800 = vunpack.c.l.b16 %v729
        %v801 = vunpack.c.l.b16 %v730
        %v802 = vunpack.c.l.b16 %v731
        %v803 = vunpack.c.l.b16 %v732
        %v804 = vunpack.c.l.b16 %v733
        %v805 = vunpack.c.l.b16 %v734
        %v806 = vunpack.c.l.b16 %v735
        %v807 = vunpack.c.l.b16 %v736
        %v808 = vpack.c.b16 %v777, %v776
        %v809 = vpack.c.b16 %v779, %v778
        %v810 = vpack.c.b16 %v781, %v780
        %v811 = vpack.c.b16 %v783, %v782
        %v812 = vpack.c.b16 %v785, %v784
        %v813 = vpack.c.b16 %v787, %v786
        %v814 = vpack.c.b16 %v789, %v788
        %v815 = vpack.c.b16 %v791, %v790
        %v816 = vpack.c.b16 %v793, %v792
        %v817 = vpack.c.b16 %v795, %v794
        %v818 = vpack.c.b16 %v797, %v796
        %v819 = vpack.c.b16 %v799, %v798
        %v820 = vpack.c.b16 %v801, %v800
        %v821 = vpack.c.b16 %v803, %v802
        %v822 = vpack.c.b16 %v805, %v804
        %v823 = vpack.c.b16 %v807, %v806
        %840 = vmatprep.subr.bf16.mxu0 0
        %841 = vmatpush1.bf16.msra.mxu0 %v808
        %842 = vmatprep.subr.bf16.mxu0 0
        %843 = vmatpush1.bf16.msra.mxu0 %v809
        %844 = vmatprep.subr.bf16.mxu0 0
        %845 = vmatpush1.bf16.msra.mxu0 %v810
        %846 = vmatprep.subr.bf16.mxu0 0
        %847 = vmatpush1.bf16.msra.mxu0 %v811
        %848 = vmatprep.subr.bf16.mxu0 0
        %849 = vmatpush1.bf16.msra.mxu0 %v812
        %850 = vmatprep.subr.bf16.mxu0 0
        %851 = vmatpush1.bf16.msra.mxu0 %v813
        %852 = vmatprep.subr.bf16.mxu0 0
        %853 = vmatpush1.bf16.msra.mxu0 %v814
        %854 = vmatprep.subr.bf16.mxu0 0
        %855 = vmatpush1.bf16.msra.mxu0 %v815
        %856 = vmatprep.subr.bf16.mxu0 0
        %857 = vmatpush1.bf16.msra.mxu0 %v816
        %858 = vmatprep.subr.bf16.mxu0 0
        %859 = vmatpush1.bf16.msra.mxu0 %v817
        %860 = vmatprep.subr.bf16.mxu0 0
        %861 = vmatpush1.bf16.msra.mxu0 %v818
        %862 = vmatprep.subr.bf16.mxu0 0
        %863 = vmatpush1.bf16.msra.mxu0 %v819
        %864 = vmatprep.subr.bf16.mxu0 0
        %865 = vmatpush1.bf16.msra.mxu0 %v820
        %866 = vmatprep.subr.bf16.mxu0 0
        %867 = vmatpush1.bf16.msra.mxu0 %v821
        %868 = vmatprep.subr.bf16.mxu0 0
        %869 = vmatpush1.bf16.msra.mxu0 %v822
        %870 = vmatprep.subr.bf16.mxu0 0
        %871 = vmatpush1.bf16.msra.mxu0 %v823
        %872 = vmatprep.mubr.bf16.mxu0 %v690
        %873 = vmatmul.mubr.bf16.gmra.mrb[0].mxu0 %v689
        %v874 = vpop.f32.mrb[0].mxu0
        %v875 = vadd.f32 %v742, %v874
        %v876 = vpop.f32.mrb[0].mxu0
        %v877 = vpop.f32.mrb[0].mxu0
        %v878 = vadd.f32 %v742, %v877
        %v879 = vpop.f32.mrb[0].mxu0
        %880 = vmatprep.mubr.bf16.mxu0 %v692
        %881 = vmatmul.mubr.bf16.gmra.mrb[0].mxu0 %v691
        %v882 = vpop.f32.mrb[0].mxu0
        %v883 = vadd.f32 %v742, %v882
        %v884 = vpop.f32.mrb[0].mxu0
        %v885 = vpop.f32.mrb[0].mxu0
        %v886 = vadd.f32 %v742, %v885
        %v887 = vpop.f32.mrb[0].mxu0
        %888 = vmatprep.mubr.bf16.mxu0 %v694
        %889 = vmatmul.mubr.bf16.gmra.mrb[0].mxu0 %v693
        %v890 = vpop.f32.mrb[0].mxu0
        %v891 = vadd.f32 %v742, %v890
        %v892 = vpop.f32.mrb[0].mxu0
        %v893 = vpop.f32.mrb[0].mxu0
        %v894 = vadd.f32 %v742, %v893
        %v895 = vpop.f32.mrb[0].mxu0
        %896 = vmatprep.mubr.bf16.mxu0 %v696
        %897 = vmatmul.mubr.bf16.gmra.mrb[0].mxu0 %v695
        %v898 = vpop.f32.mrb[0].mxu0
        %v899 = vadd.f32 %v742, %v898
        %v900 = vpop.f32.mrb[0].mxu0
        %v901 = vpop.f32.mrb[0].mxu0
        %v902 = vadd.f32 %v742, %v901
        %v903 = vpop.f32.mrb[0].mxu0
        %904 = vmatprep.mubr.bf16.mxu0 %v698
        %905 = vmatmul.mubr.bf16.gmra.mrb[0].mxu0 %v697
        %v906 = vpop.f32.mrb[0].mxu0
        %v907 = vadd.f32 %v742, %v906
        %v908 = vpop.f32.mrb[0].mxu0
        %v909 = vpop.f32.mrb[0].mxu0
        %v910 = vadd.f32 %v742, %v909
        %v911 = vpop.f32.mrb[0].mxu0
        %912 = vmatprep.mubr.bf16.mxu0 %v700
        %913 = vmatmul.mubr.bf16.gmra.mrb[0].mxu0 %v699
        %v914 = vpop.f32.mrb[0].mxu0
        %v915 = vadd.f32 %v742, %v914
        %v916 = vpop.f32.mrb[0].mxu0
        %v917 = vpop.f32.mrb[0].mxu0
        %v918 = vadd.f32 %v742, %v917
        %v919 = vpop.f32.mrb[0].mxu0
        %920 = vmatprep.mubr.bf16.mxu0 %v702
        %921 = vmatmul.mubr.bf16.gmra.mrb[0].mxu0 %v701
        %v922 = vpop.f32.mrb[0].mxu0
        %v923 = vadd.f32 %v742, %v922
        %v924 = vpop.f32.mrb[0].mxu0
        %v925 = vpop.f32.mrb[0].mxu0
        %v926 = vadd.f32 %v742, %v925
        %v927 = vpop.f32.mrb[0].mxu0
        %928 = vmatprep.mubr.bf16.mxu0 %v704
        %929 = vmatmul.mubr.bf16.gmra.mrb[0].mxu0 %v703
        %v930 = vpop.f32.mrb[0].mxu0
        %v931 = vadd.f32 %v742, %v930
        %v932 = vpop.f32.mrb[0].mxu0
        %v933 = vpop.f32.mrb[0].mxu0
        %v934 = vadd.f32 %v742, %v933
        %v935 = vpop.f32.mrb[0].mxu0
        %936 = vdwg.mxu0
        %v937 = vmax.f32 %v875, 0.0
        %v938 = vmax.f32 %v878, 0.0
        %v939 = vmax.f32 %v883, 0.0
        %v940 = vmax.f32 %v886, 0.0
        %v941 = vmax.f32 %v891, 0.0
        %v942 = vmax.f32 %v894, 0.0
        %v943 = vmax.f32 %v899, 0.0
        %v944 = vmax.f32 %v902, 0.0
        %v945 = vmax.f32 %v907, 0.0
        %v946 = vmax.f32 %v910, 0.0
        %v947 = vmax.f32 %v915, 0.0
        %v948 = vmax.f32 %v918, 0.0
        %v949 = vmax.f32 %v923, 0.0
        %v950 = vmax.f32 %v926, 0.0
        %v951 = vmax.f32 %v931, 0.0
        %v952 = vmax.f32 %v934, 0.0
        %v953 = vpack.c.bf16 %v938, %v937
        %v954 = vpack.c.bf16 %v940, %v939
        %v955 = vpack.c.bf16 %v942, %v941
        %v956 = vpack.c.bf16 %v944, %v943
        %v957 = vpack.c.bf16 %v946, %v945
        %v958 = vpack.c.bf16 %v948, %v947
        %v959 = vpack.c.bf16 %v950, %v949
        %v960 = vpack.c.bf16 %v952, %v951
        %v961 = vld [vmem:[#allocation8] sm:$0xf]
        %v962 = vld [vmem:[#allocation8 + $0x4] sm:$0xf]
        %v963 = vld [vmem:[#allocation8 + $0x8] sm:$0xf]
        %v964 = vld [vmem:[#allocation8 + $0xc] sm:$0xf]
        %v965 = vld [vmem:[#allocation8 + $0x10] sm:$0xf]
        %v966 = vld [vmem:[#allocation8 + $0x14] sm:$0xf]
        %v967 = vld [vmem:[#allocation8 + $0x18] sm:$0xf]
        %v968 = vld [vmem:[#allocation8 + $0x1c] sm:$0xf]
        %v969 = vld [vmem:[#allocation8 + $0x20] sm:$0xf]
        %v970 = vld [vmem:[#allocation8 + $0x24] sm:$0xf]
        %v971 = vld [vmem:[#allocation8 + $0x28] sm:$0xf]
        %v972 = vld [vmem:[#allocation8 + $0x2c] sm:$0xf]
        %v973 = vld [vmem:[#allocation8 + $0x30] sm:$0xf]
        %v974 = vld [vmem:[#allocation8 + $0x34] sm:$0xf]
        %v975 = vld [vmem:[#allocation8 + $0x38] sm:$0xf]
        %v976 = vld [vmem:[#allocation8 + $0x3c] sm:$0xf]
        %v977 = vld [vmem:[%s6] sm:$0x1]
        %v979 = vlaneseq
        %v980 = vshrl.u32 %v979, 7
        %v981 = vsub.s32 0, %v980
        %v982 = vrot.slane %v977, %v981
        %v1000 = vunpack.c.l.b16 %v961
        %v1001 = vunpack.c.l.b16 %v962
        %v1002 = vunpack.c.l.b16 %v963
        %v1003 = vunpack.c.l.b16 %v964
        %v1004 = vunpack.c.l.b16 %v965
        %v1005 = vunpack.c.l.b16 %v966
        %v1006 = vunpack.c.l.b16 %v967
        %v1007 = vunpack.c.l.b16 %v968
        %v1008 = vunpack.c.l.b16 %v969
        %v1009 = vunpack.c.l.b16 %v970
        %v1010 = vunpack.c.l.b16 %v971
        %v1011 = vunpack.c.l.b16 %v972
        %v1012 = vunpack.c.l.b16 %v973
        %v1013 = vunpack.c.l.b16 %v974
        %v1014 = vunpack.c.l.b16 %v975
        %v1015 = vunpack.c.l.b16 %v976
        %v1016 = vpack.c.b16 %v1001, %v1000
        %v1017 = vpack.c.b16 %v1003, %v1002
        %v1018 = vpack.c.b16 %v1005, %v1004
        %v1019 = vpack.c.b16 %v1007, %v1006
        %v1020 = vpack.c.b16 %v1009, %v1008
        %v1021 = vpack.c.b16 %v1011, %v1010
        %v1022 = vpack.c.b16 %v1013, %v1012
        %v1023 = vpack.c.b16 %v1015, %v1014
        %1032 = vmatprep.subr.bf16.mxu0 0
        %1033 = vmatpush1.bf16.msra.mxu0 %v1016
        %1034 = vmatprep.subr.bf16.mxu0 0
        %1035 = vmatpush1.bf16.msra.mxu0 %v1017
        %1036 = vmatprep.subr.bf16.mxu0 0
        %1037 = vmatpush1.bf16.msra.mxu0 %v1018
        %1038 = vmatprep.subr.bf16.mxu0 0
        %1039 = vmatpush1.bf16.msra.mxu0 %v1019
        %1040 = vmatprep.subr.bf16.mxu0 0
        %1041 = vmatpush1.bf16.msra.mxu0 %v1020
        %1042 = vmatprep.subr.bf16.mxu0 0
        %1043 = vmatpush1.bf16.msra.mxu0 %v1021
        %1044 = vmatprep.subr.bf16.mxu0 0
        %1045 = vmatpush1.bf16.msra.mxu0 %v1022
        %1046 = vmatprep.subr.bf16.mxu0 0
        %1047 = vmatpush1.bf16.msra.mxu0 %v1023
        %1048 = vmatprep.subr.bf16.mxu0 0
        %1049 = vmatpush1.bf16.msra.mxu0 0
        %1050 = vmatprep.subr.bf16.mxu0 0
        %1051 = vmatpush1.bf16.msra.mxu0 0
        %1052 = vmatprep.subr.bf16.mxu0 0
        %1053 = vmatpush1.bf16.msra.mxu0 0
        %1054 = vmatprep.subr.bf16.mxu0 0
        %1055 = vmatpush1.bf16.msra.mxu0 0
        %1056 = vmatprep.subr.bf16.mxu0 0
        %1057 = vmatpush1.bf16.msra.mxu0 0
        %1058 = vmatprep.subr.bf16.mxu0 0
        %1059 = vmatpush1.bf16.msra.mxu0 0
        %1060 = vmatprep.subr.bf16.mxu0 0
        %1061 = vmatpush1.bf16.msra.mxu0 0
        %1062 = vmatprep.subr.bf16.mxu0 0
        %1063 = vmatpush1.bf16.msra.mxu0 0
        %1064 = vmatprep.mubr.bf16.mxu0 0
        %1065 = vmatmul.mubr.bf16.gmra.mrb[0].mxu0 %v953
        %v1066 = vpop.f32.mrb[0].mxu0
        %v1067 = vadd.f32 %v982, %v1066
        %v1068 = vpop.f32.mrb[0].mxu0
        %v1069 = vpop.f32.mrb[0].mxu0
        %v1070 = vadd.f32 %v982, %v1069
        %v1071 = vpop.f32.mrb[0].mxu0
        %1072 = vmatprep.mubr.bf16.mxu0 0
        %1073 = vmatmul.mubr.bf16.gmra.mrb[0].mxu0 %v954
        %v1074 = vpop.f32.mrb[0].mxu0
        %v1075 = vadd.f32 %v982, %v1074
        %v1076 = vpop.f32.mrb[0].mxu0
        %v1077 = vpop.f32.mrb[0].mxu0
        %v1078 = vadd.f32 %v982, %v1077
        %v1079 = vpop.f32.mrb[0].mxu0
        %1080 = vmatprep.mubr.bf16.mxu0 0
        %1081 = vmatmul.mubr.bf16.gmra.mrb[0].mxu0 %v955
        %v1082 = vpop.f32.mrb[0].mxu0
        %v1083 = vadd.f32 %v982, %v1082
        %v1084 = vpop.f32.mrb[0].mxu0
        %v1085 = vpop.f32.mrb[0].mxu0
        %v1086 = vadd.f32 %v982, %v1085
        %v1087 = vpop.f32.mrb[0].mxu0
        %1088 = vmatprep.mubr.bf16.mxu0 0
        %1089 = vmatmul.mubr.bf16.gmra.mrb[0].mxu0 %v956
        %v1090 = vpop.f32.mrb[0].mxu0
        %v1091 = vadd.f32 %v982, %v1090
        %v1092 = vpop.f32.mrb[0].mxu0
        %v1093 = vpop.f32.mrb[0].mxu0
        %v1094 = vadd.f32 %v982, %v1093
        %v1095 = vpop.f32.mrb[0].mxu0
        %1096 = vmatprep.mubr.bf16.mxu0 0
        %1097 = vmatmul.mubr.bf16.gmra.mrb[0].mxu0 %v957
        %v1098 = vpop.f32.mrb[0].mxu0
        %v1099 = vadd.f32 %v982, %v1098
        %v1100 = vpop.f32.mrb[0].mxu0
        %v1101 = vpop.f32.mrb[0].mxu0
        %v1102 = vadd.f32 %v982, %v1101
        %v1103 = vpop.f32.mrb[0].mxu0
        %1104 = vmatprep.mubr.bf16.mxu0 0
        %1105 = vmatmul.mubr.bf16.gmra.mrb[0].mxu0 %v958
        %v1106 = vpop.f32.mrb[0].mxu0
        %v1107 = vadd.f32 %v982, %v1106
        %v1108 = vpop.f32.mrb[0].mxu0
        %v1109 = vpop.f32.mrb[0].mxu0
        %v1110 = vadd.f32 %v982, %v1109
        %v1111 = vpop.f32.mrb[0].mxu0
        %1112 = vmatprep.mubr.bf16.mxu0 0
        %1113 = vmatmul.mubr.bf16.gmra.mrb[0].mxu0 %v959
        %v1114 = vpop.f32.mrb[0].mxu0
        %v1115 = vadd.f32 %v982, %v1114
        %v1116 = vpop.f32.mrb[0].mxu0
        %v1117 = vpop.f32.mrb[0].mxu0
        %v1118 = vadd.f32 %v982, %v1117
        %v1119 = vpop.f32.mrb[0].mxu0
        %1120 = vmatprep.mubr.bf16.mxu0 0
        %1121 = vmatmul.mubr.bf16.gmra.mrb[0].mxu0 %v960
        %v1122 = vpop.f32.mrb[0].mxu0
        %v1123 = vadd.f32 %v982, %v1122
        %v1124 = vpop.f32.mrb[0].mxu0
        %v1125 = vpop.f32.mrb[0].mxu0
        %v1126 = vadd.f32 %v982, %v1125
        %v1127 = vpop.f32.mrb[0].mxu0
        %1128 = vdwg.mxu0
        %v1129 = vmax.f32 %v1067, 0.0
        %v1130 = vmax.f32 %v1070, 0.0
        %v1131 = vmax.f32 %v1075, 0.0
        %v1132 = vmax.f32 %v1078, 0.0
        %v1133 = vmax.f32 %v1083, 0.0
        %v1134 = vmax.f32 %v1086, 0.0
        %v1135 = vmax.f32 %v1091, 0.0
        %v1136 = vmax.f32 %v1094, 0.0
        %v1137 = vmax.f32 %v1099, 0.0
        %v1138 = vmax.f32 %v1102, 0.0
        %v1139 = vmax.f32 %v1107, 0.0
        %v1140 = vmax.f32 %v1110, 0.0
        %v1141 = vmax.f32 %v1115, 0.0
        %v1142 = vmax.f32 %v1118, 0.0
        %v1143 = vmax.f32 %v1123, 0.0
        %v1144 = vmax.f32 %v1126, 0.0
        %v1145 = vpack.c.bf16 %v1130, %v1129
        %v1146 = vpack.c.bf16 %v1132, %v1131
        %v1147 = vpack.c.bf16 %v1134, %v1133
        %v1148 = vpack.c.bf16 %v1136, %v1135
        %v1149 = vpack.c.bf16 %v1138, %v1137
        %v1150 = vpack.c.bf16 %v1140, %v1139
        %v1151 = vpack.c.bf16 %v1142, %v1141
        %v1152 = vpack.c.bf16 %v1144, %v1143
        %v1153 = vld [vmem:[#allocation10] sm:$0xf]
        %v1154 = vld [vmem:[#allocation10 + $0x4] sm:$0xf]
        %v1155 = vld [vmem:[#allocation10 + $0x8] sm:$0xf]
        %v1156 = vld [vmem:[#allocation10 + $0xc] sm:$0xf]
        %v1157 = vld [vmem:[#allocation10 + $0x10] sm:$0xf]
        %v1158 = vld [vmem:[#allocation10 + $0x14] sm:$0xf]
        %v1159 = vld [vmem:[#allocation10 + $0x18] sm:$0xf]
        %v1160 = vld [vmem:[#allocation10 + $0x1c] sm:$0xf]
        %v1161 = vld [vmem:[#allocation10 + $0x20] sm:$0xf]
        %v1162 = vld [vmem:[#allocation10 + $0x24] sm:$0xf]
        %v1163 = vld [vmem:[#allocation10 + $0x28] sm:$0xf]
        %v1164 = vld [vmem:[#allocation10 + $0x2c] sm:$0xf]
        %v1165 = vld [vmem:[#allocation10 + $0x30] sm:$0xf]
        %v1166 = vld [vmem:[#allocation10 + $0x34] sm:$0xf]
        %v1167 = vld [vmem:[#allocation10 + $0x38] sm:$0xf]
        %v1168 = vld [vmem:[#allocation10 + $0x3c] sm:$0xf]
        %v1169 = vld [vmem:[%s8] sm:$0x1]
        %v1171 = vlaneseq
        %v1172 = vshrl.u32 %v1171, 7
        %v1173 = vsub.s32 0, %v1172
        %v1174 = vrot.slane %v1169, %v1173
        %v1192 = vunpack.c.l.b16 %v1153
        %v1193 = vunpack.c.l.b16 %v1154
        %v1194 = vunpack.c.l.b16 %v1155
        %v1195 = vunpack.c.l.b16 %v1156
        %v1196 = vunpack.c.l.b16 %v1157
        %v1197 = vunpack.c.l.b16 %v1158
        %v1198 = vunpack.c.l.b16 %v1159
        %v1199 = vunpack.c.l.b16 %v1160
        %v1200 = vunpack.c.l.b16 %v1161
        %v1201 = vunpack.c.l.b16 %v1162
        %v1202 = vunpack.c.l.b16 %v1163
        %v1203 = vunpack.c.l.b16 %v1164
        %v1204 = vunpack.c.l.b16 %v1165
        %v1205 = vunpack.c.l.b16 %v1166
        %v1206 = vunpack.c.l.b16 %v1167
        %v1207 = vunpack.c.l.b16 %v1168
        %v1208 = vpack.c.b16 %v1193, %v1192
        %v1209 = vpack.c.b16 %v1195, %v1194
        %v1210 = vpack.c.b16 %v1197, %v1196
        %v1211 = vpack.c.b16 %v1199, %v1198
        %v1212 = vpack.c.b16 %v1201, %v1200
        %v1213 = vpack.c.b16 %v1203, %v1202
        %v1214 = vpack.c.b16 %v1205, %v1204
        %v1215 = vpack.c.b16 %v1207, %v1206
        %1224 = vmatprep.subr.bf16.mxu0 0
        %1225 = vmatpush1.bf16.msra.mxu0 %v1208
        %1226 = vmatprep.subr.bf16.mxu0 0
        %1227 = vmatpush1.bf16.msra.mxu0 %v1209
        %1228 = vmatprep.subr.bf16.mxu0 0
        %1229 = vmatpush1.bf16.msra.mxu0 %v1210
        %1230 = vmatprep.subr.bf16.mxu0 0
        %1231 = vmatpush1.bf16.msra.mxu0 %v1211
        %1232 = vmatprep.subr.bf16.mxu0 0
        %1233 = vmatpush1.bf16.msra.mxu0 %v1212
        %1234 = vmatprep.subr.bf16.mxu0 0
        %1235 = vmatpush1.bf16.msra.mxu0 %v1213
        %1236 = vmatprep.subr.bf16.mxu0 0
        %1237 = vmatpush1.bf16.msra.mxu0 %v1214
        %1238 = vmatprep.subr.bf16.mxu0 0
        %1239 = vmatpush1.bf16.msra.mxu0 %v1215
        %1240 = vmatprep.subr.bf16.mxu0 0
        %1241 = vmatpush1.bf16.msra.mxu0 0
        %1242 = vmatprep.subr.bf16.mxu0 0
        %1243 = vmatpush1.bf16.msra.mxu0 0
        %1244 = vmatprep.subr.bf16.mxu0 0
        %1245 = vmatpush1.bf16.msra.mxu0 0
        %1246 = vmatprep.subr.bf16.mxu0 0
        %1247 = vmatpush1.bf16.msra.mxu0 0
        %1248 = vmatprep.subr.bf16.mxu0 0
        %1249 = vmatpush1.bf16.msra.mxu0 0
        %1250 = vmatprep.subr.bf16.mxu0 0
        %1251 = vmatpush1.bf16.msra.mxu0 0
        %1252 = vmatprep.subr.bf16.mxu0 0
        %1253 = vmatpush1.bf16.msra.mxu0 0
        %1254 = vmatprep.subr.bf16.mxu0 0
        %1255 = vmatpush1.bf16.msra.mxu0 0
        %1256 = vmatprep.mubr.bf16.mxu0 0
        %1257 = vmatmul.mubr.bf16.gmra.mrb[0].mxu0 %v1145
        %v1258 = vpop.f32.mrb[0].mxu0
        %v1259 = vadd.f32 %v1174, %v1258
        %v1260 = vpop.f32.mrb[0].mxu0
        %v1261 = vpop.f32.mrb[0].mxu0
        %v1262 = vadd.f32 %v1174, %v1261
        %v1263 = vpop.f32.mrb[0].mxu0
        %1264 = vmatprep.mubr.bf16.mxu0 0
        %1265 = vmatmul.mubr.bf16.gmra.mrb[0].mxu0 %v1146
        %v1266 = vpop.f32.mrb[0].mxu0
        %v1267 = vadd.f32 %v1174, %v1266
        %v1268 = vpop.f32.mrb[0].mxu0
        %v1269 = vpop.f32.mrb[0].mxu0
        %v1270 = vadd.f32 %v1174, %v1269
        %v1271 = vpop.f32.mrb[0].mxu0
        %1272 = vmatprep.mubr.bf16.mxu0 0
        %1273 = vmatmul.mubr.bf16.gmra.mrb[0].mxu0 %v1147
        %v1274 = vpop.f32.mrb[0].mxu0
        %v1275 = vadd.f32 %v1174, %v1274
        %v1276 = vpop.f32.mrb[0].mxu0
        %v1277 = vpop.f32.mrb[0].mxu0
        %v1278 = vadd.f32 %v1174, %v1277
        %v1279 = vpop.f32.mrb[0].mxu0
        %1280 = vmatprep.mubr.bf16.mxu0 0
        %1281 = vmatmul.mubr.bf16.gmra.mrb[0].mxu0 %v1148
        %v1282 = vpop.f32.mrb[0].mxu0
        %v1283 = vadd.f32 %v1174, %v1282
        %v1284 = vpop.f32.mrb[0].mxu0
        %v1285 = vpop.f32.mrb[0].mxu0
        %v1286 = vadd.f32 %v1174, %v1285
        %v1287 = vpop.f32.mrb[0].mxu0
        %1288 = vmatprep.mubr.bf16.mxu0 0
        %1289 = vmatmul.mubr.bf16.gmra.mrb[0].mxu0 %v1149
        %v1290 = vpop.f32.mrb[0].mxu0
        %v1291 = vadd.f32 %v1174, %v1290
        %v1292 = vpop.f32.mrb[0].mxu0
        %v1293 = vpop.f32.mrb[0].mxu0
        %v1294 = vadd.f32 %v1174, %v1293
        %v1295 = vpop.f32.mrb[0].mxu0
        %1296 = vmatprep.mubr.bf16.mxu0 0
        %1297 = vmatmul.mubr.bf16.gmra.mrb[0].mxu0 %v1150
        %v1298 = vpop.f32.mrb[0].mxu0
        %v1299 = vadd.f32 %v1174, %v1298
        %v1300 = vpop.f32.mrb[0].mxu0
        %v1301 = vpop.f32.mrb[0].mxu0
        %v1302 = vadd.f32 %v1174, %v1301
        %v1303 = vpop.f32.mrb[0].mxu0
        %1304 = vmatprep.mubr.bf16.mxu0 0
        %1305 = vmatmul.mubr.bf16.gmra.mrb[0].mxu0 %v1151
        %v1306 = vpop.f32.mrb[0].mxu0
        %v1307 = vadd.f32 %v1174, %v1306
        %v1308 = vpop.f32.mrb[0].mxu0
        %v1309 = vpop.f32.mrb[0].mxu0
        %v1310 = vadd.f32 %v1174, %v1309
        %v1311 = vpop.f32.mrb[0].mxu0
        %1312 = vmatprep.mubr.bf16.mxu0 0
        %1313 = vmatmul.mubr.bf16.gmra.mrb[0].mxu0 %v1152
        %v1314 = vpop.f32.mrb[0].mxu0
        %v1315 = vadd.f32 %v1174, %v1314
        %v1316 = vpop.f32.mrb[0].mxu0
        %v1317 = vpop.f32.mrb[0].mxu0
        %v1318 = vadd.f32 %v1174, %v1317
        %v1319 = vpop.f32.mrb[0].mxu0
        %1320 = vdwg.mxu0
        %1321 = vst [vmem:[%s408] sm:$0xff] %v1259
        %1322 = vst [vmem:[%s408 + $0x8] sm:$0xff] %v1262
        %1323 = vst [vmem:[%s408 + $0x10] sm:$0xff] %v1267
        %1324 = vst [vmem:[%s408 + $0x18] sm:$0xff] %v1270
        %1325 = vst [vmem:[%s408 + $0x20] sm:$0xff] %v1275
        %1326 = vst [vmem:[%s408 + $0x28] sm:$0xff] %v1278
        %1327 = vst [vmem:[%s408 + $0x30] sm:$0xff] %v1283
        %1328 = vst [vmem:[%s408 + $0x38] sm:$0xff] %v1286
        %1329 = vst [vmem:[%s408 + $0x40] sm:$0xff] %v1291
        %1330 = vst [vmem:[%s408 + $0x48] sm:$0xff] %v1294
        %1331 = vst [vmem:[%s408 + $0x50] sm:$0xff] %v1299
        %1332 = vst [vmem:[%s408 + $0x58] sm:$0xff] %v1302
        %1333 = vst [vmem:[%s408 + $0x60] sm:$0xff] %v1307
        %1334 = vst [vmem:[%s408 + $0x68] sm:$0xff] %v1310
        %1335 = vst [vmem:[%s408 + $0x70] sm:$0xff] %v1315
        %1336 = vst [vmem:[%s408 + $0x78] sm:$0xff] %v1318
        %s1337 = sand.u32 %s230, 1
        %s1338 = scalar_lea.sflag [#allocation4], %s1337
        %s1339 = sand.u32 %s230, 1
        %s1340 = smul.addr %s1339, 128
        %s1341 = scalar_lea.vmem [#allocation11], %s1340
        // Predicated region
        $region77: #{_mlp_pallas_call.1} parent=55 // pred_check
          %p1342 = pneg %p240
        $region78: #{_mlp_pallas_call.1} parent=55 // pred_check_branch
          %1344 = sbr.rel (%p1342) target = $region80
        $region79: #{_mlp_pallas_call.1} parent=55 // pred_region
          %s1345 = smul.u32 16, %s28
          %s1347 = ssub.s32 2048, 2048
          %1348 = vsyncadd %s1338, %s1347
          %s1349 = smul.addr %s1345, 128
          %s1350 = scalar_lea.hbm %s9, %s1349
          %s1351 = sshll.u32 %s1341, 4
          %s1352 = int_to_ptr.vmem [resolvable:$true] %s1351
          %1357 = dma.vmem_to_hbm [thread:$0]  %s1352, 2048, %s1350, %s1338, 128, 128, 8
        $region80: #{_mlp_pallas_call.1} parent=55 // pred_fallthru
          _
      $region56: #{_mlp_pallas_call.1} parent=5 // pred_fallthru
        _
      %p1358 = scmp.le.s32.totalorder 2, %s23
      // Predicated region
      $region81: #{_mlp_pallas_call.1} parent=5 // pred_check
        %p1359 = pneg %p1358
      $region82: #{_mlp_pallas_call.1} parent=5 // pred_check_branch
        %1361 = sbr.rel (%p1359) target = $region84
      $region83: #{_mlp_pallas_call.1} parent=5 // pred_region
        %s1362 = ssub.s32 %s23, 2
        // Predicated region
        $region85: #{_mlp_pallas_call.1} parent=83 // pred_check
          %p1363 = pneg %p246
        $region86: #{_mlp_pallas_call.1} parent=83 // pred_check_branch
          %1365 = sbr.rel (%p1363) target = $region88
        $region87: #{_mlp_pallas_call.1} parent=83 // pred_region
          %s1366 = sand.u32 %s231, 1
          %s1367 = scalar_lea.sflag [#allocation4], %s1366
          %s1368 = sand.u32 %s231, 1
          %s1369 = smul.addr %s1368, 128
          %s1370 = scalar_lea.vmem [#allocation11], %s1369
          %1371 = dma.done %s1367, 2048
        $region88: #{_mlp_pallas_call.1} parent=83 // pred_fallthru
          _
      $region84: #{_mlp_pallas_call.1} parent=5 // pred_fallthru
        _
    $region6: #{_mlp_pallas_call.1} parent=1 // loop_footer
      %s27 = sadd.s32 1, %s23
    $region7: #{_mlp_pallas_call.1} parent=1 // loop_footer_branch
      %22 = sbr.rel target = $region3
    $region8: #{_mlp_pallas_call.1} parent=1 // loop_exit
      _
    %1372 = vsyncpa [#allocation3], 1
    %s1373 = scalar_lea.sflag [#allocation3], 1
    %1374 = vsyncpa %s1373, 1
    %1375 = vsyncpa [#allocation6], 1
    %1376 = vsyncpa [#allocation9], 1
    %1377 = vsyncpa [#allocation4], 1
    %s1378 = scalar_lea.sflag [#allocation4], 1
    %1379 = vsyncpa %s1378, 1

</llo_original>
